<compile_context>
chip_gen: v6e
topology: v6e:2x2x1
jax: 0.10.0
libtpu: 0.0.40
codegen_flags: <defaults>
</compile_context>

<pallas_src>
import functools

import jax
import jax.numpy as jnp
from jax import lax
from jax.experimental import pallas as pl
from jax.experimental.pallas import tpu as pltpu

_LANE = 128


def _laplacian_euler_kernel(scal_ref, a_ref, x_ref, x0_ref, o_ref, *,
                            n_steps, step_size, unroll, carry_state):
    """Integrates all Euler steps for one (N_pad, TD) column slab.

    scal_ref : SMEM f32[2]           [alpha (already sigmoid'ed), beta]
    a_ref    : VMEM [N_pad, N_pad]   dense adjacency (bf16/f32), grid-invariant
    x_ref    : VMEM f32[N_pad, TD]   initial state slab
    x0_ref   : VMEM f32[N_pad, TD]   source term slab (odefunc.x0)
    o_ref    : VMEM f32[N_pad, TD]   output slab (also running state if large)
    """
    alpha = scal_ref[0]
    beta = scal_ref[1]

    # Hoisted, loop-invariant coefficients:
    #   x + h*(alpha*(A@x - x) + beta*x0) == (h*alpha)*A@x + (1-h*alpha)*x + (h*beta)*x0
    c_ax = step_size * alpha
    c_x = 1.0 - step_size * alpha
    hbx0 = (step_size * beta) * x0_ref[...]          # f32, computed once

    if carry_state:
        # State fits comfortably in vregs: keep it in the fori_loop carry and
        # store the slab once at the end (saves a full-slab vst+vld per step).
        def body(_, x):
            ax = jnp.dot(a_ref[...], x.astype(a_ref.dtype),
                         preferred_element_type=jnp.float32)
            return c_ax * ax + c_x * x + hbx0

        o_ref[...] = lax.fori_loop(0, n_steps, body, x_ref[...], unroll=unroll)
    else:
        # Large slab: Euler state lives directly in the output ref (VMEM).
        o_ref[...] = x_ref[...]

        def body(_, carry):
            x = o_ref[...]
            ax = jnp.dot(a_ref[...], x.astype(a_ref.dtype),
                         preferred_element_type=jnp.float32)
            o_ref[...] = c_ax * ax + c_x * x + hbx0
            return carry

        lax.fori_loop(0, n_steps, body, 0, unroll=unroll)


def _choose_td(d_pad, n_pad, vmem_cap, a_bytes, slack=4 << 20):
    """Largest slab width (multiple of 128, capped at 512) such that
    1xA + 6 double-buffered f32 slabs fit under `vmem_cap`, TD divides d_pad,
    and >=2 grid tiles remain (v7x megacore) whenever d_pad allows it."""
    slab_budget = max(vmem_cap - a_bytes - slack, 6 * n_pad * 4 * _LANE)
    max_td_fit = max(_LANE, (slab_budget // (6 * n_pad * 4)) // _LANE * _LANE)
    upper = min(512, max_td_fit, d_pad)
    if d_pad >= 2 * _LANE:
        upper = min(upper, d_pad // 2)      # keep >=2 grid tiles for megacore
    td = _LANE
    for cand in range(_LANE, upper + 1, _LANE):
        if d_pad % cand == 0:
            td = cand
    return td


def constant_ode_block_forward(x, x0, edge_index, edge_weight, *,
                               time, alpha_train, beta_train,
                               step_size=1.0, a_dtype=jnp.bfloat16):
    """JAX glue (sparse->dense A, sigmoid, padding) + Pallas hot path."""
    N, D = x.shape

    n_steps = int(round(float(time) / float(step_size)))
    if abs(n_steps * float(step_size) - float(time)) > 1e-6:
        raise ValueError("time must be an integer multiple of step_size "
                         "for fixed-step euler")

    # Pad node and feature axes to multiples of 128 (full MXU tiles,
    # unmasked vld/vst). Zero padding is exactly preserved by every step.
    N_pad = max(_LANE, ((N + _LANE - 1) // _LANE) * _LANE)
    D_pad = max(_LANE, ((D + _LANE - 1) // _LANE) * _LANE)

    # spmm(edge_index, w, N, N, x): out[row] += w * x[col]  =>  A[row, col] = w
    row, col = edge_index[0], edge_index[1]
    A = (jnp.zeros((N_pad, N_pad), jnp.float32)
         .at[row, col].add(edge_weight.astype(jnp.float32))
         .astype(a_dtype))

    alpha = jax.nn.sigmoid(jnp.asarray(alpha_train, jnp.float32))
    scal = jnp.stack([alpha, jnp.asarray(beta_train, jnp.float32)])

    x_p = jnp.zeros((N_pad, D_pad), jnp.float32).at[:N, :D].set(
        x.astype(jnp.float32))
    x0_p = jnp.zeros((N_pad, D_pad), jnp.float32).at[:N, :D].set(
        x0.astype(jnp.float32))

    # ---- VMEM accounting: 1 x resident A + 6 slab buffers + compiler slack.
    a_bytes = N_pad * N_pad * jnp.dtype(a_dtype).itemsize
    slack = 4 << 20
    try:
        phys = int(pltpu.get_tpu_info().vmem_capacity_bytes)
    except Exception:  # pragma: no cover - conservative fallback (v7x per-TC)
        phys = 64 << 20
    cap = int(phys * 7 // 8)   # leave ~12.5% for the compiler

    min_needed = a_bytes + 6 * N_pad * _LANE * 4 + slack
    if min_needed > cap:
        # TODO(synk): HBM-streamed / block-sparse A path for graphs whose dense
        # adjacency does not fit in VMEM is not implemented.
        raise ValueError(
            f"Graph with N={N} (padded {N_pad}) needs ~{min_needed / 2**20:.1f} MiB "
            f"of VMEM for a resident dense A but only ~{cap / 2**20:.1f} MiB is "
            "available on this chip; use a smaller graph or a narrower A dtype.")

    TD = _choose_td(D_pad, N_pad, cap, a_bytes, slack)
    n_d_tiles = D_pad // TD
    slab_bytes = N_pad * TD * 4

    # Bounded unroll of the time loop (guard n_steps == 0).
    unroll = max(1, n_steps if n_steps <= 8 else 4)

    # Carry the state in vregs only when the slab is small (<= 64 KiB).
    carry_state = (N_pad * TD * 4) <= (64 << 10)

    cost = pl.CostEstimate(
        flops=2 * N_pad * N_pad * D_pad * max(n_steps, 1),
        transcendentals=0,
        bytes_accessed=a_bytes + 3 * N_pad * D_pad * 4)

    kernel = functools.partial(_laplacian_euler_kernel,
                               n_steps=n_steps,
                               step_size=float(step_size),
                               unroll=unroll,
                               carry_state=carry_state)

    # TODO(synk): adaptive solvers (dopri5 + atol/rtol step control) and
    # fp8 (v7x) / int8 (v6e) A quantization paths are not implemented.
    def _call(single_buffer_a):
        if single_buffer_a:
            # A's index_map never changes -> one buffer is enough; this halves
            # the dominant VMEM term (critical on v7x's 64 MiB per-core VMEM).
            a_spec = pl.BlockSpec((N_pad, N_pad), lambda i: (0, 0),
                                  pipeline_mode=pl.Buffered(1))
            limit = min(max(a_bytes + 6 * slab_bytes + slack, 32 << 20), cap)
        else:
            a_spec = pl.BlockSpec((N_pad, N_pad), lambda i: (0, 0))
            limit = min(max(2 * a_bytes + 6 * slab_bytes + slack, 32 << 20), cap)
        return pl.pallas_call(
            kernel,
            out_shape=jax.ShapeDtypeStruct((N_pad, D_pad), jnp.float32),
            grid=(n_d_tiles,),
            in_specs=[
                pl.BlockSpec(memory_space=pltpu.MemorySpace.SMEM),  # [alpha, beta]
                a_spec,                                             # A, resident
                pl.BlockSpec((N_pad, TD), lambda i: (0, i)),        # x slab
                pl.BlockSpec((N_pad, TD), lambda i: (0, i)),        # x0 slab
            ],
            out_specs=pl.BlockSpec((N_pad, TD), lambda i: (0, i)),
            compiler_params=pltpu.CompilerParams(
                dimension_semantics=("parallel",),
                vmem_limit_bytes=int(limit)),
            cost_estimate=cost,
        )(scal, A, x_p, x0_p)

    try:
        out = _call(single_buffer_a=True)
    except Exception:
        # Fallback if pl.Buffered(1) is rejected by this jax/Mosaic version.
        out = _call(single_buffer_a=False)

    return out[:N, :D].astype(x.dtype)


# ----------------------------------------------------------------------------
# Test harness
# ----------------------------------------------------------------------------
def _make_graph(key, n, e):
    k1, k2, k3 = jax.random.split(key, 3)
    rows = jax.random.randint(k1, (e,), 0, n)
    cols = jax.random.randint(k2, (e,), 0, n)
    edge_index = jnp.stack([rows, cols]).astype(jnp.int32)
    w_raw = jax.random.uniform(k3, (e,), jnp.float32) + 0.1
    deg = jnp.zeros((n,), jnp.float32).at[rows].add(w_raw)
    edge_weight = w_raw / deg[rows]
    return edge_index, edge_weight


def _reference(x, x0, edge_index, edge_weight, *, time, alpha_train,
               beta_train, step_size=1.0):
    """Pure-JAX f32 reference of the fixed-step Euler integration."""
    n = x.shape[0]
    A = (jnp.zeros((n, n), jnp.float32)
         .at[edge_index[0], edge_index[1]].add(edge_weight.astype(jnp.float32)))
    alpha = jax.nn.sigmoid(jnp.float32(alpha_train))
    state = x.astype(jnp.float32)
    src = x0.astype(jnp.float32)
    for _ in range(int(round(time / step_size))):
        f = alpha * (A @ state - state) + jnp.float32(beta_train) * src
        state = state + step_size * f
    return state


if __name__ == "__main__":
    key = jax.random.PRNGKey(0)
    alpha_train = 1.0            # odefunc Parameter init (deterministic)
    beta_train = 0.1             # odefunc Parameter init (deterministic)

    # ---- Test 1: small aligned-ish graph, 4 Euler steps ---------------------
    N, D, E, TIME = 64, 32, 256, 4
    k_x, k_g = jax.random.split(key)
    x = jax.random.normal(k_x, (N, D), jnp.float32)
    edge_index, edge_weight = _make_graph(k_g, N, E)
    x0 = x                        # self.odefunc.x0 = x.clone().detach()

    ref = _reference(x, x0, edge_index, edge_weight, time=TIME,
                     alpha_train=alpha_train, beta_train=beta_train)

    z32 = constant_ode_block_forward(
        x, x0, edge_index, edge_weight, time=TIME,
        alpha_train=alpha_train, beta_train=beta_train,
        step_size=1.0, a_dtype=jnp.float32)
    z32 = jax.block_until_ready(z32)
    assert bool(jnp.allclose(z32, ref, atol=1e-4, rtol=1e-4)), \
        "f32 path mismatch vs reference (test 1)"

    zbf = constant_ode_block_forward(
        x, x0, edge_index, edge_weight, time=TIME,
        alpha_train=alpha_train, beta_train=beta_train, step_size=1.0)
    zbf = jax.block_until_ready(zbf)
    assert bool(jnp.allclose(zbf, ref, atol=5e-2, rtol=5e-2)), \
        "bf16 path mismatch vs reference (test 1)"

    # ---- Test 2: unaligned N and multi-tile D (exercises padding + grid) ----
    N2, D2, E2, TIME2 = 50, 200, 200, 3
    k_x2, k_g2 = jax.random.split(jax.random.fold_in(key, 1))
    x2 = jax.random.normal(k_x2, (N2, D2), jnp.float32)
    edge_index2, edge_weight2 = _make_graph(k_g2, N2, E2)
    x02 = x2

    ref2 = _reference(x2, x02, edge_index2, edge_weight2, time=TIME2,
                      alpha_train=alpha_train, beta_train=beta_train)
    z2 = constant_ode_block_forward(
        x2, x02, edge_index2, edge_weight2, time=TIME2,
        alpha_train=alpha_train, beta_train=beta_train,
        step_size=1.0, a_dtype=jnp.float32)
    z2 = jax.block_until_ready(z2)
    assert bool(jnp.allclose(z2, ref2, atol=1e-4, rtol=1e-4)), \
        "f32 path mismatch vs reference (test 2, padded/multi-tile)"

    print("KERNEL_OK")
</pallas_src>

<mosaic_0001>
module attributes {stable_mosaic.version = 11 : i64} {
  func.func @_laplacian_euler_kernel(%arg0: i32, %arg1: memref<2xf32, #tpu.memory_space<smem>>, %arg2: memref<128x128xf32, #tpu.memory_space<vmem>>, %arg3: memref<128x128xf32, #tpu.memory_space<vmem>>, %arg4: memref<128x128xf32, #tpu.memory_space<vmem>>, %arg5: memref<128x128xf32, #tpu.memory_space<vmem>>) attributes {dimension_semantics = [#tpu.dimension_semantics<parallel>], iteration_bounds = array<i64: 1>, scalar_prefetch = 0 : i64, scratch_operands = 0 : i64, tpu.core_type = #tpu.core_type<tc>, window_params = [{transform_indices = @transform_0, window_bounds = array<i64: 2>}, {pipeline_mode = #tpu.pipeline_mode<synchronous>, transform_indices = @transform_1, window_bounds = array<i64: 128, 128>}, {transform_indices = @transform_2, window_bounds = array<i64: 128, 128>}, {transform_indices = @transform_3, window_bounds = array<i64: 128, 128>}, {transform_indices = @transform_4, window_bounds = array<i64: 128, 128>}]} {
    %c0 = arith.constant 0 : index
    %0 = memref.load %arg1[%c0] : memref<2xf32, #tpu.memory_space<smem>>
    %c1 = arith.constant 1 : index
    %1 = memref.load %arg1[%c1] : memref<2xf32, #tpu.memory_space<smem>>
    %cst = arith.constant 1.000000e+00 : f32
    %2 = arith.mulf %cst, %0 : f32
    %cst_0 = arith.constant 1.000000e+00 : f32
    %3 = arith.mulf %cst_0, %0 : f32
    %cst_1 = arith.constant 1.000000e+00 : f32
    %4 = arith.subf %cst_1, %3 : f32
    %cst_2 = arith.constant 1.000000e+00 : f32
    %5 = arith.mulf %cst_2, %1 : f32
    %c0_3 = arith.constant 0 : index
    %c0_4 = arith.constant 0 : index
    %6 = vector.load %arg4[%c0_3, %c0_4] : memref<128x128xf32, #tpu.memory_space<vmem>>, vector<128x128xf32>
    %7 = vector.broadcast %5 : f32 to vector<128x128xf32>
    %8 = arith.mulf %7, %6 : vector<128x128xf32>
    %c0_5 = arith.constant 0 : index
    %c0_6 = arith.constant 0 : index
    %9 = vector.load %arg3[%c0_5, %c0_6] : memref<128x128xf32, #tpu.memory_space<vmem>>, vector<128x128xf32>
    %c0_i32 = arith.constant 0 : i32
    %c0_7 = arith.constant 0 : index
    %c0_8 = arith.constant 0 : index
    %10 = vector.load %arg2[%c0_7, %c0_8] : memref<128x128xf32, #tpu.memory_space<vmem>>, vector<128x128xf32>
    %cst_9 = arith.constant dense<0.000000e+00> : vector<128x128xf32>
    %11 = tpu.matmul %10, %9, %cst_9 {dimension_numbers = #tpu.dot_dimension_numbers<[1], [0], [0], [1], [0, 0, 1, 1], [], []>} : vector<128x128xf32>, vector<128x128xf32>, vector<128x128xf32> -> vector<128x128xf32>
    %12 = vector.broadcast %2 : f32 to vector<128x128xf32>
    %13 = arith.mulf %12, %11 : vector<128x128xf32>
    %14 = vector.broadcast %4 : f32 to vector<128x128xf32>
    %15 = arith.mulf %14, %9 : vector<128x128xf32>
    %16 = arith.addf %13, %15 : vector<128x128xf32>
    %17 = arith.addf %16, %8 : vector<128x128xf32>
    %c1_i32 = arith.constant 1 : i32
    %c0_10 = arith.constant 0 : index
    %c0_11 = arith.constant 0 : index
    %18 = vector.load %arg2[%c0_10, %c0_11] : memref<128x128xf32, #tpu.memory_space<vmem>>, vector<128x128xf32>
    %cst_12 = arith.constant dense<0.000000e+00> : vector<128x128xf32>
    %19 = tpu.matmul %18, %17, %cst_12 {dimension_numbers = #tpu.dot_dimension_numbers<[1], [0], [0], [1], [0, 0, 1, 1], [], []>} : vector<128x128xf32>, vector<128x128xf32>, vector<128x128xf32> -> vector<128x128xf32>
    %20 = vector.broadcast %2 : f32 to vector<128x128xf32>
    %21 = arith.mulf %20, %19 : vector<128x128xf32>
    %22 = vector.broadcast %4 : f32 to vector<128x128xf32>
    %23 = arith.mulf %22, %17 : vector<128x128xf32>
    %24 = arith.addf %21, %23 : vector<128x128xf32>
    %25 = arith.addf %24, %8 : vector<128x128xf32>
    %c2_i32 = arith.constant 2 : i32
    %c0_13 = arith.constant 0 : index
    %c0_14 = arith.constant 0 : index
    %26 = vector.load %arg2[%c0_13, %c0_14] : memref<128x128xf32, #tpu.memory_space<vmem>>, vector<128x128xf32>
    %cst_15 = arith.constant dense<0.000000e+00> : vector<128x128xf32>
    %27 = tpu.matmul %26, %25, %cst_15 {dimension_numbers = #tpu.dot_dimension_numbers<[1], [0], [0], [1], [0, 0, 1, 1], [], []>} : vector<128x128xf32>, vector<128x128xf32>, vector<128x128xf32> -> vector<128x128xf32>
    %28 = vector.broadcast %2 : f32 to vector<128x128xf32>
    %29 = arith.mulf %28, %27 : vector<128x128xf32>
    %30 = vector.broadcast %4 : f32 to vector<128x128xf32>
    %31 = arith.mulf %30, %25 : vector<128x128xf32>
    %32 = arith.addf %29, %31 : vector<128x128xf32>
    %33 = arith.addf %32, %8 : vector<128x128xf32>
    %c3_i32 = arith.constant 3 : i32
    %c0_16 = arith.constant 0 : index
    %c0_17 = arith.constant 0 : index
    %34 = vector.load %arg2[%c0_16, %c0_17] : memref<128x128xf32, #tpu.memory_space<vmem>>, vector<128x128xf32>
    %cst_18 = arith.constant dense<0.000000e+00> : vector<128x128xf32>
    %35 = tpu.matmul %34, %33, %cst_18 {dimension_numbers = #tpu.dot_dimension_numbers<[1], [0], [0], [1], [0, 0, 1, 1], [], []>} : vector<128x128xf32>, vector<128x128xf32>, vector<128x128xf32> -> vector<128x128xf32>
    %36 = vector.broadcast %2 : f32 to vector<128x128xf32>
    %37 = arith.mulf %36, %35 : vector<128x128xf32>
    %38 = vector.broadcast %4 : f32 to vector<128x128xf32>
    %39 = arith.mulf %38, %33 : vector<128x128xf32>
    %40 = arith.addf %37, %39 : vector<128x128xf32>
    %41 = arith.addf %40, %8 : vector<128x128xf32>
    %c0_19 = arith.constant 0 : index
    %c0_20 = arith.constant 0 : index
    %42 = vector.load %arg5[%c0_19, %c0_20] : memref<128x128xf32, #tpu.memory_space<vmem>>, vector<128x128xf32>
    tpu.vector_store %arg5[%c0_19, %c0_20], %41 {strides = array<i32>} : memref<128x128xf32, #tpu.memory_space<vmem>>, vector<128x128xf32>,
    return
  }
  func.func @transform_0(%arg0: i32) -> i32 {
    %c0_i32 = arith.constant 0 : i32
    %c0_i32_0 = arith.constant 0 : i32
    return %c0_i32 : i32
  }
  func.func @transform_1(%arg0: i32) -> (i32, i32) {
    %c0_i32 = arith.constant 0 : i32
    %c0_i32_0 = arith.constant 0 : i32
    %c0_i32_1 = arith.constant 0 : i32
    return %c0_i32, %c0_i32_0 : i32, i32
  }
  func.func @transform_2(%arg0: i32) -> (i32, i32) {
    %c0_i32 = arith.constant 0 : i32
    %c0_i32_0 = arith.constant 0 : i32
    return %c0_i32, %arg0 : i32, i32
  }
  func.func @transform_3(%arg0: i32) -> (i32, i32) {
    %c0_i32 = arith.constant 0 : i32
    %c0_i32_0 = arith.constant 0 : i32
    return %c0_i32, %arg0 : i32, i32
  }
  func.func @transform_4(%arg0: i32) -> (i32, i32) {
    %c0_i32 = arith.constant 0 : i32
    %c0_i32_0 = arith.constant 0 : i32
    return %c0_i32, %arg0 : i32, i32
  }
}

module attributes {stable_mosaic.version = 11 : i64} {
  func.func @_laplacian_euler_kernel(%arg0: i32, %arg1: memref<2xf32, #tpu.memory_space<smem>>, %arg2: memref<128x128xf32, #tpu.memory_space<vmem>>, %arg3: memref<128x128xf32, #tpu.memory_space<vmem>>, %arg4: memref<128x128xf32, #tpu.memory_space<vmem>>, %arg5: memref<128x128xf32, #tpu.memory_space<vmem>>) attributes {dimension_semantics = [#tpu.dimension_semantics<parallel>], iteration_bounds = array<i64: 1>, scalar_prefetch = 0 : i64, scratch_operands = 0 : i64, tpu.core_type = #tpu.core_type<tc>, window_params = [{transform_indices = @transform_0, window_bounds = array<i64: 2>}, {pipeline_mode = #tpu.pipeline_mode<synchronous>, transform_indices = @transform_1, window_bounds = array<i64: 128, 128>}, {transform_indices = @transform_2, window_bounds = array<i64: 128, 128>}, {transform_indices = @transform_3, window_bounds = array<i64: 128, 128>}, {transform_indices = @transform_4, window_bounds = array<i64: 128, 128>}]} {
    %c0 = arith.constant 0 : index
    %0 = memref.load %arg1[%c0] : memref<2xf32, #tpu.memory_space<smem>>
    %c1 = arith.constant 1 : index
    %1 = memref.load %arg1[%c1] : memref<2xf32, #tpu.memory_space<smem>>
    %cst = arith.constant 1.000000e+00 : f32
    %2 = arith.mulf %cst, %0 : f32
    %cst_0 = arith.constant 1.000000e+00 : f32
    %3 = arith.mulf %cst_0, %0 : f32
    %cst_1 = arith.constant 1.000000e+00 : f32
    %4 = arith.subf %cst_1, %3 : f32
    %cst_2 = arith.constant 1.000000e+00 : f32
    %5 = arith.mulf %cst_2, %1 : f32
    %c0_3 = arith.constant 0 : index
    %c0_4 = arith.constant 0 : index
    %6 = vector.load %arg4[%c0_3, %c0_4] : memref<128x128xf32, #tpu.memory_space<vmem>>, vector<128x128xf32>
    %7 = vector.broadcast %5 : f32 to vector<128x128xf32>
    %8 = arith.mulf %7, %6 : vector<128x128xf32>
    %c0_5 = arith.constant 0 : index
    %c0_6 = arith.constant 0 : index
    %9 = vector.load %arg3[%c0_5, %c0_6] : memref<128x128xf32, #tpu.memory_space<vmem>>, vector<128x128xf32>
    %c0_i32 = arith.constant 0 : i32
    %c0_7 = arith.constant 0 : index
    %c0_8 = arith.constant 0 : index
    %10 = vector.load %arg2[%c0_7, %c0_8] : memref<128x128xf32, #tpu.memory_space<vmem>>, vector<128x128xf32>
    %cst_9 = arith.constant dense<0.000000e+00> : vector<128x128xf32>
    %11 = tpu.matmul %10, %9, %cst_9 {dimension_numbers = #tpu.dot_dimension_numbers<[1], [0], [0], [1], [0, 0, 1, 1], [], []>} : vector<128x128xf32>, vector<128x128xf32>, vector<128x128xf32> -> vector<128x128xf32>
    %12 = vector.broadcast %2 : f32 to vector<128x128xf32>
    %13 = arith.mulf %12, %11 : vector<128x128xf32>
    %14 = vector.broadcast %4 : f32 to vector<128x128xf32>
    %15 = arith.mulf %14, %9 : vector<128x128xf32>
    %16 = arith.addf %13, %15 : vector<128x128xf32>
    %17 = arith.addf %16, %8 : vector<128x128xf32>
    %c1_i32 = arith.constant 1 : i32
    %c0_10 = arith.constant 0 : index
    %c0_11 = arith.constant 0 : index
    %18 = vector.load %arg2[%c0_10, %c0_11] : memref<128x128xf32, #tpu.memory_space<vmem>>, vector<128x128xf32>
    %cst_12 = arith.constant dense<0.000000e+00> : vector<128x128xf32>
    %19 = tpu.matmul %18, %17, %cst_12 {dimension_numbers = #tpu.dot_dimension_numbers<[1], [0], [0], [1], [0, 0, 1, 1], [], []>} : vector<128x128xf32>, vector<128x128xf32>, vector<128x128xf32> -> vector<128x128xf32>
    %20 = vector.broadcast %2 : f32 to vector<128x128xf32>
    %21 = arith.mulf %20, %19 : vector<128x128xf32>
    %22 = vector.broadcast %4 : f32 to vector<128x128xf32>
    %23 = arith.mulf %22, %17 : vector<128x128xf32>
    %24 = arith.addf %21, %23 : vector<128x128xf32>
    %25 = arith.addf %24, %8 : vector<128x128xf32>
    %c2_i32 = arith.constant 2 : i32
    %c0_13 = arith.constant 0 : index
    %c0_14 = arith.constant 0 : index
    %26 = vector.load %arg2[%c0_13, %c0_14] : memref<128x128xf32, #tpu.memory_space<vmem>>, vector<128x128xf32>
    %cst_15 = arith.constant dense<0.000000e+00> : vector<128x128xf32>
    %27 = tpu.matmul %26, %25, %cst_15 {dimension_numbers = #tpu.dot_dimension_numbers<[1], [0], [0], [1], [0, 0, 1, 1], [], []>} : vector<128x128xf32>, vector<128x128xf32>, vector<128x128xf32> -> vector<128x128xf32>
    %28 = vector.broadcast %2 : f32 to vector<128x128xf32>
    %29 = arith.mulf %28, %27 : vector<128x128xf32>
    %30 = vector.broadcast %4 : f32 to vector<128x128xf32>
    %31 = arith.mulf %30, %25 : vector<128x128xf32>
    %32 = arith.addf %29, %31 : vector<128x128xf32>
    %33 = arith.addf %32, %8 : vector<128x128xf32>
    %c3_i32 = arith.constant 3 : i32
    %c0_16 = arith.constant 0 : index
    %c0_17 = arith.constant 0 : index
    %34 = vector.load %arg2[%c0_16, %c0_17] : memref<128x128xf32, #tpu.memory_space<vmem>>, vector<128x128xf32>
    %cst_18 = arith.constant dense<0.000000e+00> : vector<128x128xf32>
    %35 = tpu.matmul %34, %33, %cst_18 {dimension_numbers = #tpu.dot_dimension_numbers<[1], [0], [0], [1], [0, 0, 1, 1], [], []>} : vector<128x128xf32>, vector<128x128xf32>, vector<128x128xf32> -> vector<128x128xf32>
    %36 = vector.broadcast %2 : f32 to vector<128x128xf32>
    %37 = arith.mulf %36, %35 : vector<128x128xf32>
    %38 = vector.broadcast %4 : f32 to vector<128x128xf32>
    %39 = arith.mulf %38, %33 : vector<128x128xf32>
    %40 = arith.addf %37, %39 : vector<128x128xf32>
    %41 = arith.addf %40, %8 : vector<128x128xf32>
    %c0_19 = arith.constant 0 : index
    %c0_20 = arith.constant 0 : index
    %42 = vector.load %arg5[%c0_19, %c0_20] : memref<128x128xf32, #tpu.memory_space<vmem>>, vector<128x128xf32>
    tpu.vector_store %arg5[%c0_19, %c0_20], %41 {strides = array<i32>} : memref<128x128xf32, #tpu.memory_space<vmem>>, vector<128x128xf32>,
    return
  }
  func.func @transform_0(%arg0: i32) -> i32 {
    %c0_i32 = arith.constant 0 : i32
    %c0_i32_0 = arith.constant 0 : i32
    return %c0_i32 : i32
  }
  func.func @transform_1(%arg0: i32) -> (i32, i32) {
    %c0_i32 = arith.constant 0 : i32
    %c0_i32_0 = arith.constant 0 : i32
    %c0_i32_1 = arith.constant 0 : i32
    return %c0_i32, %c0_i32_0 : i32, i32
  }
  func.func @transform_2(%arg0: i32) -> (i32, i32) {
    %c0_i32 = arith.constant 0 : i32
    %c0_i32_0 = arith.constant 0 : i32
    return %c0_i32, %arg0 : i32, i32
  }
  func.func @transform_3(%arg0: i32) -> (i32, i32) {
    %c0_i32 = arith.constant 0 : i32
    %c0_i32_0 = arith.constant 0 : i32
    return %c0_i32, %arg0 : i32, i32
  }
  func.func @transform_4(%arg0: i32) -> (i32, i32) {
    %c0_i32 = arith.constant 0 : i32
    %c0_i32_0 = arith.constant 0 : i32
    return %c0_i32, %arg0 : i32, i32
  }
}

</mosaic_0001>

<llo_original>
// kernel: tpu_custom_call.1
$region0: #{tpu_custom_call.1}
  #allocation0 [shape = 'u32[]', space=smem, size = 0x4, offset = 0x4, fixed_abs, tag = 'smem constant byte address 0x4 - core index']
  #allocation1 [shape = 'u32[144,128]{1,0:T(1,128)}', space=vmem, size = 0x12000, scoped, tag = 'internal scratch']
  %s0 = inlined_call_operand.hbm [shape: f32[2], index: 0, kind: input, shape index: {}]
  %s1 = inlined_call_operand.hbm [shape: f32[128,128], index: 1, kind: input, shape index: {}]
  %s2 = inlined_call_operand.hbm [shape: f32[128,128], index: 2, kind: input, shape index: {}]
  %s3 = inlined_call_operand.hbm [shape: f32[128,128], index: 3, kind: input, shape index: {}]
  %s4 = inlined_call_operand.hbm [shape: f32[128,128], index: 4, kind: output, shape index: {}]
  %s5 = sld [smem:[#allocation0]]
  $region42: #{tpu_custom_call.1} parent=0
    _
  %s7 = ssub.s32 1, %s5
  %s8 = scalar_select 0, %s7, %s5
  $region1: #{tpu_custom_call.1} parent=0
    #allocation2 [shape = 'u8[512]{0}', space=smem, size = 0x200, scoped, tag = 'input window, operand 0, single buffered']
    #allocation3 [shape = 's32[1]{0}', space=sflag, size = 0x4, scoped, tag = 'scoped memory for tpu_custom_call.1']
    #allocation4 [shape = 's32[1]{0}', space=sflag, size = 0x4, scoped, tag = 'scoped memory for tpu_custom_call.1']
    #allocation5 [shape = 's32[1]{0}', space=sflag, size = 0x4, scoped, tag = 'scoped memory for tpu_custom_call.1']
    #allocation6 [shape = 'u8[65536]{0}', space=vmem, size = 0x10000, scoped, tag = 'input window, operand 1, single buffered']
    #allocation7 [shape = 'u8[65536]{0}', space=vmem, size = 0x10000, scoped, tag = 'input window, operand 2, single buffered']
    #allocation8 [shape = 's32[1]{0}', space=sflag, size = 0x4, scoped, tag = 'scoped memory for tpu_custom_call.1']
    #allocation9 [shape = 'u8[65536]{0}', space=vmem, size = 0x10000, scoped, tag = 'input window, operand 3, single buffered']
    #allocation10 [shape = 'u8[65536]{0}', space=vmem, size = 0x10000, scoped, tag = 'output window, operand 0, single buffered']
    %9 = vsyncpa [#allocation5], 0
    %10 = vsyncpa [#allocation3], 0
    %11 = vsyncpa [#allocation8], 0
    %12 = vsyncpa [#allocation4], 0
    // Predicated region
    $region2: #{tpu_custom_call.1} parent=1 // pred_check
      _
    $region3: #{tpu_custom_call.1} parent=1 // pred_check_branch
      %14 = sbr.rel (0) target = $region5
    $region4: #{tpu_custom_call.1} parent=1 // pred_region
      %s16 = ssub.s32 16, 16
      %17 = vsyncadd [#allocation5], %s16
      %20 = dma.hbm_to_smem %s0, 16, [#allocation2], [#allocation5]
    $region5: #{tpu_custom_call.1} parent=1 // pred_fallthru
      _
    // Predicated region
    $region6: #{tpu_custom_call.1} parent=1 // pred_check
      _
    $region7: #{tpu_custom_call.1} parent=1 // pred_check_branch
      %22 = sbr.rel (0) target = $region9
    $region8: #{tpu_custom_call.1} parent=1 // pred_region
      %s24 = ssub.s32 2048, 2048
      %25 = vsyncadd [#allocation3], %s24
      %s26 = sshll.u32 [#allocation6], 4
      %s27 = int_to_ptr.vmem [resolvable:$true] %s26
      %32 = dma.hbm_to_vmem [thread:$0]  %s1, 2048, %s27, [#allocation3], 128, 128, 8
    $region9: #{tpu_custom_call.1} parent=1 // pred_fallthru
      _
    // Predicated region
    $region10: #{tpu_custom_call.1} parent=1 // pred_check
      _
    $region11: #{tpu_custom_call.1} parent=1 // pred_check_branch
      %34 = sbr.rel (0) target = $region13
    $region12: #{tpu_custom_call.1} parent=1 // pred_region
      %s36 = ssub.s32 2048, 2048
      %37 = vsyncadd [#allocation8], %s36
      %s38 = sshll.u32 [#allocation7], 4
      %s39 = int_to_ptr.vmem [resolvable:$true] %s38
      %44 = dma.hbm_to_vmem [thread:$0]  %s2, 2048, %s39, [#allocation8], 128, 128, 8
    $region13: #{tpu_custom_call.1} parent=1 // pred_fallthru
      _
    // Predicated region
    $region14: #{tpu_custom_call.1} parent=1 // pred_check
      _
    $region15: #{tpu_custom_call.1} parent=1 // pred_check_branch
      %46 = sbr.rel (0) target = $region17
    $region16: #{tpu_custom_call.1} parent=1 // pred_region
      %s48 = ssub.s32 2048, 2048
      %49 = vsyncadd [#allocation8], %s48
      %s50 = sshll.u32 [#allocation9], 4
      %s51 = int_to_ptr.vmem [resolvable:$true] %s50
      %56 = dma.hbm_to_vmem [thread:$0]  %s3, 2048, %s51, [#allocation8], 128, 128, 8
    $region17: #{tpu_custom_call.1} parent=1 // pred_fallthru
      _
    // Predicated region
    $region18: #{tpu_custom_call.1} parent=1 // pred_check
      _
    $region19: #{tpu_custom_call.1} parent=1 // pred_check_branch
      %58 = sbr.rel (0) target = $region21
    $region20: #{tpu_custom_call.1} parent=1 // pred_region
      %59 = dma.done [#allocation5], 16
    $region21: #{tpu_custom_call.1} parent=1 // pred_fallthru
      _
    // Predicated region
    $region22: #{tpu_custom_call.1} parent=1 // pred_check
      _
    $region23: #{tpu_custom_call.1} parent=1 // pred_check_branch
      %61 = sbr.rel (0) target = $region25
    $region24: #{tpu_custom_call.1} parent=1 // pred_region
      %62 = dma.done [#allocation3], 2048
    $region25: #{tpu_custom_call.1} parent=1 // pred_fallthru
      _
    // Predicated region
    $region26: #{tpu_custom_call.1} parent=1 // pred_check
      _
    $region27: #{tpu_custom_call.1} parent=1 // pred_check_branch
      %64 = sbr.rel (0) target = $region29
    $region28: #{tpu_custom_call.1} parent=1 // pred_region
      %65 = dma.done [#allocation8], 2048
    $region29: #{tpu_custom_call.1} parent=1 // pred_fallthru
      _
    // Predicated region
    $region30: #{tpu_custom_call.1} parent=1 // pred_check
      _
    $region31: #{tpu_custom_call.1} parent=1 // pred_check_branch
      %67 = sbr.rel (0) target = $region33
    $region32: #{tpu_custom_call.1} parent=1 // pred_region
      %68 = dma.done [#allocation8], 2048
    $region33: #{tpu_custom_call.1} parent=1 // pred_fallthru
      _
    %69 = sfence
    %s70 = sld [smem:[#allocation2]]
    %s71 = sld [smem:[#allocation2 + $0x1]]
    %s72 = ssub.f32 1.0, %s70
    %v73 = vld [vmem:[#allocation9] sm:$0xff]
    %v74 = vld [vmem:[#allocation9 + $0x8] sm:$0xff]
    %v75 = vld [vmem:[#allocation9 + $0x10] sm:$0xff]
    %v76 = vld [vmem:[#allocation9 + $0x18] sm:$0xff]
    %v77 = vld [vmem:[#allocation9 + $0x20] sm:$0xff]
    %v78 = vld [vmem:[#allocation9 + $0x28] sm:$0xff]
    %v79 = vld [vmem:[#allocation9 + $0x30] sm:$0xff]
    %v80 = vld [vmem:[#allocation9 + $0x38] sm:$0xff]
    %v81 = vld [vmem:[#allocation9 + $0x40] sm:$0xff]
    %v82 = vld [vmem:[#allocation9 + $0x48] sm:$0xff]
    %v83 = vld [vmem:[#allocation9 + $0x50] sm:$0xff]
    %v84 = vld [vmem:[#allocation9 + $0x58] sm:$0xff]
    %v85 = vld [vmem:[#allocation9 + $0x60] sm:$0xff]
    %v86 = vld [vmem:[#allocation9 + $0x68] sm:$0xff]
    %v87 = vld [vmem:[#allocation9 + $0x70] sm:$0xff]
    %v88 = vld [vmem:[#allocation9 + $0x78] sm:$0xff]
    %v89 = vstv %s71
    %v90 = vmul.f32 %v89, %v73
    %v91 = vmul.f32 %v89, %v74
    %v92 = vmul.f32 %v89, %v75
    %v93 = vmul.f32 %v89, %v76
    %v94 = vmul.f32 %v89, %v77
    %v95 = vmul.f32 %v89, %v78
    %v96 = vmul.f32 %v89, %v79
    %v97 = vmul.f32 %v89, %v80
    %v98 = vmul.f32 %v89, %v81
    %v99 = vmul.f32 %v89, %v82
    %v100 = vmul.f32 %v89, %v83
    %v101 = vmul.f32 %v89, %v84
    %v102 = vmul.f32 %v89, %v85
    %v103 = vmul.f32 %v89, %v86
    %v104 = vmul.f32 %v89, %v87
    %v105 = vmul.f32 %v89, %v88
    %v106 = vld [vmem:[#allocation7] sm:$0xff]
    %v107 = vld [vmem:[#allocation7 + $0x8] sm:$0xff]
    %v108 = vld [vmem:[#allocation7 + $0x10] sm:$0xff]
    %v109 = vld [vmem:[#allocation7 + $0x18] sm:$0xff]
    %v110 = vld [vmem:[#allocation7 + $0x20] sm:$0xff]
    %v111 = vld [vmem:[#allocation7 + $0x28] sm:$0xff]
    %v112 = vld [vmem:[#allocation7 + $0x30] sm:$0xff]
    %v113 = vld [vmem:[#allocation7 + $0x38] sm:$0xff]
    %v114 = vld [vmem:[#allocation7 + $0x40] sm:$0xff]
    %v115 = vld [vmem:[#allocation7 + $0x48] sm:$0xff]
    %v116 = vld [vmem:[#allocation7 + $0x50] sm:$0xff]
    %v117 = vld [vmem:[#allocation7 + $0x58] sm:$0xff]
    %v118 = vld [vmem:[#allocation7 + $0x60] sm:$0xff]
    %v119 = vld [vmem:[#allocation7 + $0x68] sm:$0xff]
    %v120 = vld [vmem:[#allocation7 + $0x70] sm:$0xff]
    %v121 = vld [vmem:[#allocation7 + $0x78] sm:$0xff]
    %v122 = vld [vmem:[#allocation6] sm:$0xff]
    %v123 = vld [vmem:[#allocation6 + $0x8] sm:$0xff]
    %v124 = vld [vmem:[#allocation6 + $0x10] sm:$0xff]
    %v125 = vld [vmem:[#allocation6 + $0x18] sm:$0xff]
    %v126 = vld [vmem:[#allocation6 + $0x20] sm:$0xff]
    %v127 = vld [vmem:[#allocation6 + $0x28] sm:$0xff]
    %v128 = vld [vmem:[#allocation6 + $0x30] sm:$0xff]
    %v129 = vld [vmem:[#allocation6 + $0x38] sm:$0xff]
    %v130 = vld [vmem:[#allocation6 + $0x40] sm:$0xff]
    %v131 = vld [vmem:[#allocation6 + $0x48] sm:$0xff]
    %v132 = vld [vmem:[#allocation6 + $0x50] sm:$0xff]
    %v133 = vld [vmem:[#allocation6 + $0x58] sm:$0xff]
    %v134 = vld [vmem:[#allocation6 + $0x60] sm:$0xff]
    %v135 = vld [vmem:[#allocation6 + $0x68] sm:$0xff]
    %v136 = vld [vmem:[#allocation6 + $0x70] sm:$0xff]
    %v137 = vld [vmem:[#allocation6 + $0x78] sm:$0xff]
    %138 = vmatprep.subr.mxu0 0.0
    %139 = vmatpush1.msra.mxu0 %v121
    %140 = vmatprep.subr.mxu0 0.0
    %141 = vmatpush1.msra.mxu0 %v120
    %142 = vmatprep.subr.mxu0 0.0
    %143 = vmatpush1.msra.mxu0 %v119
    %144 = vmatprep.subr.mxu0 0.0
    %145 = vmatpush1.msra.mxu0 %v118
    %146 = vmatprep.subr.mxu0 0.0
    %147 = vmatpush1.msra.mxu0 %v117
    %148 = vmatprep.subr.mxu0 0.0
    %149 = vmatpush1.msra.mxu0 %v116
    %150 = vmatprep.subr.mxu0 0.0
    %151 = vmatpush1.msra.mxu0 %v115
    %152 = vmatprep.subr.mxu0 0.0
    %153 = vmatpush1.msra.mxu0 %v114
    %154 = vmatprep.subr.mxu0 0.0
    %155 = vmatpush1.msra.mxu0 %v113
    %156 = vmatprep.subr.mxu0 0.0
    %157 = vmatpush1.msra.mxu0 %v112
    %158 = vmatprep.subr.mxu0 0.0
    %159 = vmatpush1.msra.mxu0 %v111
    %160 = vmatprep.subr.mxu0 0.0
    %161 = vmatpush1.msra.mxu0 %v110
    %162 = vmatprep.subr.mxu0 0.0
    %163 = vmatpush1.msra.mxu0 %v109
    %164 = vmatprep.subr.mxu0 0.0
    %165 = vmatpush1.msra.mxu0 %v108
    %166 = vmatprep.subr.mxu0 0.0
    %167 = vmatpush1.msra.mxu0 %v107
    %168 = vmatprep.subr.mxu0 0.0
    %169 = vmatpush1.msra.mxu0 %v106
    %170 = vmatprep.subr.mxu0 0.0
    %171 = vmatpush2.msra.mxu0 0.0
    %172 = vmatprep.subr.mxu0 0.0
    %173 = vmatpush2.msra.mxu0 0.0
    %174 = vmatprep.subr.mxu0 0.0
    %175 = vmatpush2.msra.mxu0 0.0
    %176 = vmatprep.subr.mxu0 0.0
    %177 = vmatpush2.msra.mxu0 0.0
    %178 = vmatprep.subr.mxu0 0.0
    %179 = vmatpush2.msra.mxu0 0.0
    %180 = vmatprep.subr.mxu0 0.0
    %181 = vmatpush2.msra.mxu0 0.0
    %182 = vmatprep.subr.mxu0 0.0
    %183 = vmatpush2.msra.mxu0 0.0
    %184 = vmatprep.subr.mxu0 0.0
    %185 = vmatpush2.msra.mxu0 0.0
    %186 = vmatprep.subr.mxu0 0.0
    %187 = vmatpush2.msra.mxu0 0.0
    %188 = vmatprep.subr.mxu0 0.0
    %189 = vmatpush2.msra.mxu0 0.0
    %190 = vmatprep.subr.mxu0 0.0
    %191 = vmatpush2.msra.mxu0 0.0
    %192 = vmatprep.subr.mxu0 0.0
    %193 = vmatpush2.msra.mxu0 0.0
    %194 = vmatprep.subr.mxu0 0.0
    %195 = vmatpush2.msra.mxu0 0.0
    %196 = vmatprep.subr.mxu0 0.0
    %197 = vmatpush2.msra.mxu0 0.0
    %198 = vmatprep.subr.mxu0 0.0
    %199 = vmatpush2.msra.mxu0 0.0
    %200 = vmatprep.subr.mxu0 0.0
    %201 = vmatpush2.msra.mxu0 0.0
    %202 = vmatprep.mubr.f32.mxu0 0.0
    %203 = vmatmul.mubr.f32.gmra.mxu0 %v122
    %v204 = vpop.f32.mrf.mxu0
    %v205 = vadd.f32 0.0, %v204
    %v206 = vpop.f32.mrf.mxu0
    %207 = vmatprep.mubr.f32.mxu0 0.0
    %208 = vmatmul.mubr.f32.gmra.mxu0 %v123
    %v209 = vpop.f32.mrf.mxu0
    %v210 = vadd.f32 0.0, %v209
    %v211 = vpop.f32.mrf.mxu0
    %212 = vmatprep.mubr.f32.mxu0 0.0
    %213 = vmatmul.mubr.f32.gmra.mxu0 %v124
    %v214 = vpop.f32.mrf.mxu0
    %v215 = vadd.f32 0.0, %v214
    %v216 = vpop.f32.mrf.mxu0
    %217 = vmatprep.mubr.f32.mxu0 0.0
    %218 = vmatmul.mubr.f32.gmra.mxu0 %v125
    %v219 = vpop.f32.mrf.mxu0
    %v220 = vadd.f32 0.0, %v219
    %v221 = vpop.f32.mrf.mxu0
    %222 = vmatprep.mubr.f32.mxu0 0.0
    %223 = vmatmul.mubr.f32.gmra.mxu0 %v126
    %v224 = vpop.f32.mrf.mxu0
    %v225 = vadd.f32 0.0, %v224
    %v226 = vpop.f32.mrf.mxu0
    %227 = vmatprep.mubr.f32.mxu0 0.0
    %228 = vmatmul.mubr.f32.gmra.mxu0 %v127
    %v229 = vpop.f32.mrf.mxu0
    %v230 = vadd.f32 0.0, %v229
    %v231 = vpop.f32.mrf.mxu0
    %232 = vmatprep.mubr.f32.mxu0 0.0
    %233 = vmatmul.mubr.f32.gmra.mxu0 %v128
    %v234 = vpop.f32.mrf.mxu0
    %v235 = vadd.f32 0.0, %v234
    %v236 = vpop.f32.mrf.mxu0
    %237 = vmatprep.mubr.f32.mxu0 0.0
    %238 = vmatmul.mubr.f32.gmra.mxu0 %v129
    %v239 = vpop.f32.mrf.mxu0
    %v240 = vadd.f32 0.0, %v239
    %v241 = vpop.f32.mrf.mxu0
    %242 = vmatprep.mubr.f32.mxu0 0.0
    %243 = vmatmul.mubr.f32.gmra.mxu0 %v130
    %v244 = vpop.f32.mrf.mxu0
    %v245 = vadd.f32 0.0, %v244
    %v246 = vpop.f32.mrf.mxu0
    %247 = vmatprep.mubr.f32.mxu0 0.0
    %248 = vmatmul.mubr.f32.gmra.mxu0 %v131
    %v249 = vpop.f32.mrf.mxu0
    %v250 = vadd.f32 0.0, %v249
    %v251 = vpop.f32.mrf.mxu0
    %252 = vmatprep.mubr.f32.mxu0 0.0
    %253 = vmatmul.mubr.f32.gmra.mxu0 %v132
    %v254 = vpop.f32.mrf.mxu0
    %v255 = vadd.f32 0.0, %v254
    %v256 = vpop.f32.mrf.mxu0
    %257 = vmatprep.mubr.f32.mxu0 0.0
    %258 = vmatmul.mubr.f32.gmra.mxu0 %v133
    %v259 = vpop.f32.mrf.mxu0
    %v260 = vadd.f32 0.0, %v259
    %v261 = vpop.f32.mrf.mxu0
    %262 = vmatprep.mubr.f32.mxu0 0.0
    %263 = vmatmul.mubr.f32.gmra.mxu0 %v134
    %v264 = vpop.f32.mrf.mxu0
    %v265 = vadd.f32 0.0, %v264
    %v266 = vpop.f32.mrf.mxu0
    %267 = vmatprep.mubr.f32.mxu0 0.0
    %268 = vmatmul.mubr.f32.gmra.mxu0 %v135
    %v269 = vpop.f32.mrf.mxu0
    %v270 = vadd.f32 0.0, %v269
    %v271 = vpop.f32.mrf.mxu0
    %272 = vmatprep.mubr.f32.mxu0 0.0
    %273 = vmatmul.mubr.f32.gmra.mxu0 %v136
    %v274 = vpop.f32.mrf.mxu0
    %v275 = vadd.f32 0.0, %v274
    %v276 = vpop.f32.mrf.mxu0
    %277 = vmatprep.mubr.f32.mxu0 0.0
    %278 = vmatmul.mubr.f32.gmra.mxu0 %v137
    %v279 = vpop.f32.mrf.mxu0
    %v280 = vadd.f32 0.0, %v279
    %v281 = vpop.f32.mrf.mxu0
    %282 = vdwg.mxu0
    %v283 = vstv %s70
    %v284 = vmul.f32 %v283, %v205
    %v285 = vmul.f32 %v283, %v210
    %v286 = vmul.f32 %v283, %v215
    %v287 = vmul.f32 %v283, %v220
    %v288 = vmul.f32 %v283, %v225
    %v289 = vmul.f32 %v283, %v230
    %v290 = vmul.f32 %v283, %v235
    %v291 = vmul.f32 %v283, %v240
    %v292 = vmul.f32 %v283, %v245
    %v293 = vmul.f32 %v283, %v250
    %v294 = vmul.f32 %v283, %v255
    %v295 = vmul.f32 %v283, %v260
    %v296 = vmul.f32 %v283, %v265
    %v297 = vmul.f32 %v283, %v270
    %v298 = vmul.f32 %v283, %v275
    %v299 = vmul.f32 %v283, %v280
    %v300 = vstv %s72
    %v301 = vmul.f32 %v300, %v106
    %v302 = vmul.f32 %v300, %v107
    %v303 = vmul.f32 %v300, %v108
    %v304 = vmul.f32 %v300, %v109
    %v305 = vmul.f32 %v300, %v110
    %v306 = vmul.f32 %v300, %v111
    %v307 = vmul.f32 %v300, %v112
    %v308 = vmul.f32 %v300, %v113
    %v309 = vmul.f32 %v300, %v114
    %v310 = vmul.f32 %v300, %v115
    %v311 = vmul.f32 %v300, %v116
    %v312 = vmul.f32 %v300, %v117
    %v313 = vmul.f32 %v300, %v118
    %v314 = vmul.f32 %v300, %v119
    %v315 = vmul.f32 %v300, %v120
    %v316 = vmul.f32 %v300, %v121
    %v317 = vadd.f32 %v284, %v301
    %v318 = vadd.f32 %v285, %v302
    %v319 = vadd.f32 %v286, %v303
    %v320 = vadd.f32 %v287, %v304
    %v321 = vadd.f32 %v288, %v305
    %v322 = vadd.f32 %v289, %v306
    %v323 = vadd.f32 %v290, %v307
    %v324 = vadd.f32 %v291, %v308
    %v325 = vadd.f32 %v292, %v309
    %v326 = vadd.f32 %v293, %v310
    %v327 = vadd.f32 %v294, %v311
    %v328 = vadd.f32 %v295, %v312
    %v329 = vadd.f32 %v296, %v313
    %v330 = vadd.f32 %v297, %v314
    %v331 = vadd.f32 %v298, %v315
    %v332 = vadd.f32 %v299, %v316
    %v333 = vadd.f32 %v317, %v90
    %v334 = vadd.f32 %v318, %v91
    %v335 = vadd.f32 %v319, %v92
    %v336 = vadd.f32 %v320, %v93
    %v337 = vadd.f32 %v321, %v94
    %v338 = vadd.f32 %v322, %v95
    %v339 = vadd.f32 %v323, %v96
    %v340 = vadd.f32 %v324, %v97
    %v341 = vadd.f32 %v325, %v98
    %v342 = vadd.f32 %v326, %v99
    %v343 = vadd.f32 %v327, %v100
    %v344 = vadd.f32 %v328, %v101
    %v345 = vadd.f32 %v329, %v102
    %v346 = vadd.f32 %v330, %v103
    %v347 = vadd.f32 %v331, %v104
    %v348 = vadd.f32 %v332, %v105
    %349 = vmatprep.subr.mxu0 0.0
    %350 = vmatpush1.msra.mxu0 %v348
    %351 = vmatprep.subr.mxu0 0.0
    %352 = vmatpush1.msra.mxu0 %v347
    %353 = vmatprep.subr.mxu0 0.0
    %354 = vmatpush1.msra.mxu0 %v346
    %355 = vmatprep.subr.mxu0 0.0
    %356 = vmatpush1.msra.mxu0 %v345
    %357 = vmatprep.subr.mxu0 0.0
    %358 = vmatpush1.msra.mxu0 %v344
    %359 = vmatprep.subr.mxu0 0.0
    %360 = vmatpush1.msra.mxu0 %v343
    %361 = vmatprep.subr.mxu0 0.0
    %362 = vmatpush1.msra.mxu0 %v342
    %363 = vmatprep.subr.mxu0 0.0
    %364 = vmatpush1.msra.mxu0 %v341
    %365 = vmatprep.subr.mxu0 0.0
    %366 = vmatpush1.msra.mxu0 %v340
    %367 = vmatprep.subr.mxu0 0.0
    %368 = vmatpush1.msra.mxu0 %v339
    %369 = vmatprep.subr.mxu0 0.0
    %370 = vmatpush1.msra.mxu0 %v338
    %371 = vmatprep.subr.mxu0 0.0
    %372 = vmatpush1.msra.mxu0 %v337
    %373 = vmatprep.subr.mxu0 0.0
    %374 = vmatpush1.msra.mxu0 %v336
    %375 = vmatprep.subr.mxu0 0.0
    %376 = vmatpush1.msra.mxu0 %v335
    %377 = vmatprep.subr.mxu0 0.0
    %378 = vmatpush1.msra.mxu0 %v334
    %379 = vmatprep.subr.mxu0 0.0
    %380 = vmatpush1.msra.mxu0 %v333
    %381 = vmatprep.subr.mxu0 0.0
    %382 = vmatpush2.msra.mxu0 0.0
    %383 = vmatprep.subr.mxu0 0.0
    %384 = vmatpush2.msra.mxu0 0.0
    %385 = vmatprep.subr.mxu0 0.0
    %386 = vmatpush2.msra.mxu0 0.0
    %387 = vmatprep.subr.mxu0 0.0
    %388 = vmatpush2.msra.mxu0 0.0
    %389 = vmatprep.subr.mxu0 0.0
    %390 = vmatpush2.msra.mxu0 0.0
    %391 = vmatprep.subr.mxu0 0.0
    %392 = vmatpush2.msra.mxu0 0.0
    %393 = vmatprep.subr.mxu0 0.0
    %394 = vmatpush2.msra.mxu0 0.0
    %395 = vmatprep.subr.mxu0 0.0
    %396 = vmatpush2.msra.mxu0 0.0
    %397 = vmatprep.subr.mxu0 0.0
    %398 = vmatpush2.msra.mxu0 0.0
    %399 = vmatprep.subr.mxu0 0.0
    %400 = vmatpush2.msra.mxu0 0.0
    %401 = vmatprep.subr.mxu0 0.0
    %402 = vmatpush2.msra.mxu0 0.0
    %403 = vmatprep.subr.mxu0 0.0
    %404 = vmatpush2.msra.mxu0 0.0
    %405 = vmatprep.subr.mxu0 0.0
    %406 = vmatpush2.msra.mxu0 0.0
    %407 = vmatprep.subr.mxu0 0.0
    %408 = vmatpush2.msra.mxu0 0.0
    %409 = vmatprep.subr.mxu0 0.0
    %410 = vmatpush2.msra.mxu0 0.0
    %411 = vmatprep.subr.mxu0 0.0
    %412 = vmatpush2.msra.mxu0 0.0
    %413 = vmatprep.mubr.f32.mxu0 0.0
    %414 = vmatmul.mubr.f32.gmra.mxu0 %v122
    %v415 = vpop.f32.mrf.mxu0
    %v416 = vadd.f32 0.0, %v415
    %v417 = vpop.f32.mrf.mxu0
    %418 = vmatprep.mubr.f32.mxu0 0.0
    %419 = vmatmul.mubr.f32.gmra.mxu0 %v123
    %v420 = vpop.f32.mrf.mxu0
    %v421 = vadd.f32 0.0, %v420
    %v422 = vpop.f32.mrf.mxu0
    %423 = vmatprep.mubr.f32.mxu0 0.0
    %424 = vmatmul.mubr.f32.gmra.mxu0 %v124
    %v425 = vpop.f32.mrf.mxu0
    %v426 = vadd.f32 0.0, %v425
    %v427 = vpop.f32.mrf.mxu0
    %428 = vmatprep.mubr.f32.mxu0 0.0
    %429 = vmatmul.mubr.f32.gmra.mxu0 %v125
    %v430 = vpop.f32.mrf.mxu0
    %v431 = vadd.f32 0.0, %v430
    %v432 = vpop.f32.mrf.mxu0
    %433 = vmatprep.mubr.f32.mxu0 0.0
    %434 = vmatmul.mubr.f32.gmra.mxu0 %v126
    %v435 = vpop.f32.mrf.mxu0
    %v436 = vadd.f32 0.0, %v435
    %v437 = vpop.f32.mrf.mxu0
    %438 = vmatprep.mubr.f32.mxu0 0.0
    %439 = vmatmul.mubr.f32.gmra.mxu0 %v127
    %v440 = vpop.f32.mrf.mxu0
    %v441 = vadd.f32 0.0, %v440
    %v442 = vpop.f32.mrf.mxu0
    %443 = vmatprep.mubr.f32.mxu0 0.0
    %444 = vmatmul.mubr.f32.gmra.mxu0 %v128
    %v445 = vpop.f32.mrf.mxu0
    %v446 = vadd.f32 0.0, %v445
    %v447 = vpop.f32.mrf.mxu0
    %448 = vmatprep.mubr.f32.mxu0 0.0
    %449 = vmatmul.mubr.f32.gmra.mxu0 %v129
    %v450 = vpop.f32.mrf.mxu0
    %v451 = vadd.f32 0.0, %v450
    %v452 = vpop.f32.mrf.mxu0
    %453 = vmatprep.mubr.f32.mxu0 0.0
    %454 = vmatmul.mubr.f32.gmra.mxu0 %v130
    %v455 = vpop.f32.mrf.mxu0
    %v456 = vadd.f32 0.0, %v455
    %v457 = vpop.f32.mrf.mxu0
    %458 = vmatprep.mubr.f32.mxu0 0.0
    %459 = vmatmul.mubr.f32.gmra.mxu0 %v131
    %v460 = vpop.f32.mrf.mxu0
    %v461 = vadd.f32 0.0, %v460
    %v462 = vpop.f32.mrf.mxu0
    %463 = vmatprep.mubr.f32.mxu0 0.0
    %464 = vmatmul.mubr.f32.gmra.mxu0 %v132
    %v465 = vpop.f32.mrf.mxu0
    %v466 = vadd.f32 0.0, %v465
    %v467 = vpop.f32.mrf.mxu0
    %468 = vmatprep.mubr.f32.mxu0 0.0
    %469 = vmatmul.mubr.f32.gmra.mxu0 %v133
    %v470 = vpop.f32.mrf.mxu0
    %v471 = vadd.f32 0.0, %v470
    %v472 = vpop.f32.mrf.mxu0
    %473 = vmatprep.mubr.f32.mxu0 0.0
    %474 = vmatmul.mubr.f32.gmra.mxu0 %v134
    %v475 = vpop.f32.mrf.mxu0
    %v476 = vadd.f32 0.0, %v475
    %v477 = vpop.f32.mrf.mxu0
    %478 = vmatprep.mubr.f32.mxu0 0.0
    %479 = vmatmul.mubr.f32.gmra.mxu0 %v135
    %v480 = vpop.f32.mrf.mxu0
    %v481 = vadd.f32 0.0, %v480
    %v482 = vpop.f32.mrf.mxu0
    %483 = vmatprep.mubr.f32.mxu0 0.0
    %484 = vmatmul.mubr.f32.gmra.mxu0 %v136
    %v485 = vpop.f32.mrf.mxu0
    %v486 = vadd.f32 0.0, %v485
    %v487 = vpop.f32.mrf.mxu0
    %488 = vmatprep.mubr.f32.mxu0 0.0
    %489 = vmatmul.mubr.f32.gmra.mxu0 %v137
    %v490 = vpop.f32.mrf.mxu0
    %v491 = vadd.f32 0.0, %v490
    %v492 = vpop.f32.mrf.mxu0
    %493 = vdwg.mxu0
    %v494 = vmul.f32 %v283, %v416
    %v495 = vmul.f32 %v283, %v421
    %v496 = vmul.f32 %v283, %v426
    %v497 = vmul.f32 %v283, %v431
    %v498 = vmul.f32 %v283, %v436
    %v499 = vmul.f32 %v283, %v441
    %v500 = vmul.f32 %v283, %v446
    %v501 = vmul.f32 %v283, %v451
    %v502 = vmul.f32 %v283, %v456
    %v503 = vmul.f32 %v283, %v461
    %v504 = vmul.f32 %v283, %v466
    %v505 = vmul.f32 %v283, %v471
    %v506 = vmul.f32 %v283, %v476
    %v507 = vmul.f32 %v283, %v481
    %v508 = vmul.f32 %v283, %v486
    %v509 = vmul.f32 %v283, %v491
    %v510 = vmul.f32 %v300, %v333
    %v511 = vmul.f32 %v300, %v334
    %v512 = vmul.f32 %v300, %v335
    %v513 = vmul.f32 %v300, %v336
    %v514 = vmul.f32 %v300, %v337
    %v515 = vmul.f32 %v300, %v338
    %v516 = vmul.f32 %v300, %v339
    %v517 = vmul.f32 %v300, %v340
    %v518 = vmul.f32 %v300, %v341
    %v519 = vmul.f32 %v300, %v342
    %v520 = vmul.f32 %v300, %v343
    %v521 = vmul.f32 %v300, %v344
    %v522 = vmul.f32 %v300, %v345
    %v523 = vmul.f32 %v300, %v346
    %v524 = vmul.f32 %v300, %v347
    %v525 = vmul.f32 %v300, %v348
    %v526 = vadd.f32 %v494, %v510
    %v527 = vadd.f32 %v495, %v511
    %v528 = vadd.f32 %v496, %v512
    %v529 = vadd.f32 %v497, %v513
    %v530 = vadd.f32 %v498, %v514
    %v531 = vadd.f32 %v499, %v515
    %v532 = vadd.f32 %v500, %v516
    %v533 = vadd.f32 %v501, %v517
    %v534 = vadd.f32 %v502, %v518
    %v535 = vadd.f32 %v503, %v519
    %v536 = vadd.f32 %v504, %v520
    %v537 = vadd.f32 %v505, %v521
    %v538 = vadd.f32 %v506, %v522
    %v539 = vadd.f32 %v507, %v523
    %v540 = vadd.f32 %v508, %v524
    %v541 = vadd.f32 %v509, %v525
    %v542 = vadd.f32 %v526, %v90
    %v543 = vadd.f32 %v527, %v91
    %v544 = vadd.f32 %v528, %v92
    %v545 = vadd.f32 %v529, %v93
    %v546 = vadd.f32 %v530, %v94
    %v547 = vadd.f32 %v531, %v95
    %v548 = vadd.f32 %v532, %v96
    %v549 = vadd.f32 %v533, %v97
    %v550 = vadd.f32 %v534, %v98
    %v551 = vadd.f32 %v535, %v99
    %v552 = vadd.f32 %v536, %v100
    %v553 = vadd.f32 %v537, %v101
    %v554 = vadd.f32 %v538, %v102
    %v555 = vadd.f32 %v539, %v103
    %v556 = vadd.f32 %v540, %v104
    %v557 = vadd.f32 %v541, %v105
    %558 = vmatprep.subr.mxu0 0.0
    %559 = vmatpush1.msra.mxu0 %v557
    %560 = vmatprep.subr.mxu0 0.0
    %561 = vmatpush1.msra.mxu0 %v556
    %562 = vmatprep.subr.mxu0 0.0
    %563 = vmatpush1.msra.mxu0 %v555
    %564 = vmatprep.subr.mxu0 0.0
    %565 = vmatpush1.msra.mxu0 %v554
    %566 = vmatprep.subr.mxu0 0.0
    %567 = vmatpush1.msra.mxu0 %v553
    %568 = vmatprep.subr.mxu0 0.0
    %569 = vmatpush1.msra.mxu0 %v552
    %570 = vmatprep.subr.mxu0 0.0
    %571 = vmatpush1.msra.mxu0 %v551
    %572 = vmatprep.subr.mxu0 0.0
    %573 = vmatpush1.msra.mxu0 %v550
    %574 = vmatprep.subr.mxu0 0.0
    %575 = vmatpush1.msra.mxu0 %v549
    %576 = vmatprep.subr.mxu0 0.0
    %577 = vmatpush1.msra.mxu0 %v548
    %578 = vmatprep.subr.mxu0 0.0
    %579 = vmatpush1.msra.mxu0 %v547
    %580 = vmatprep.subr.mxu0 0.0
    %581 = vmatpush1.msra.mxu0 %v546
    %582 = vmatprep.subr.mxu0 0.0
    %583 = vmatpush1.msra.mxu0 %v545
    %584 = vmatprep.subr.mxu0 0.0
    %585 = vmatpush1.msra.mxu0 %v544
    %586 = vmatprep.subr.mxu0 0.0
    %587 = vmatpush1.msra.mxu0 %v543
    %588 = vmatprep.subr.mxu0 0.0
    %589 = vmatpush1.msra.mxu0 %v542
    %590 = vmatprep.subr.mxu0 0.0
    %591 = vmatpush2.msra.mxu0 0.0
    %592 = vmatprep.subr.mxu0 0.0
    %593 = vmatpush2.msra.mxu0 0.0
    %594 = vmatprep.subr.mxu0 0.0
    %595 = vmatpush2.msra.mxu0 0.0
    %596 = vmatprep.subr.mxu0 0.0
    %597 = vmatpush2.msra.mxu0 0.0
    %598 = vmatprep.subr.mxu0 0.0
    %599 = vmatpush2.msra.mxu0 0.0
    %600 = vmatprep.subr.mxu0 0.0
    %601 = vmatpush2.msra.mxu0 0.0
    %602 = vmatprep.subr.mxu0 0.0
    %603 = vmatpush2.msra.mxu0 0.0
    %604 = vmatprep.subr.mxu0 0.0
    %605 = vmatpush2.msra.mxu0 0.0
    %606 = vmatprep.subr.mxu0 0.0
    %607 = vmatpush2.msra.mxu0 0.0
    %608 = vmatprep.subr.mxu0 0.0
    %609 = vmatpush2.msra.mxu0 0.0
    %610 = vmatprep.subr.mxu0 0.0
    %611 = vmatpush2.msra.mxu0 0.0
    %612 = vmatprep.subr.mxu0 0.0
    %613 = vmatpush2.msra.mxu0 0.0
    %614 = vmatprep.subr.mxu0 0.0
    %615 = vmatpush2.msra.mxu0 0.0
    %616 = vmatprep.subr.mxu0 0.0
    %617 = vmatpush2.msra.mxu0 0.0
    %618 = vmatprep.subr.mxu0 0.0
    %619 = vmatpush2.msra.mxu0 0.0
    %620 = vmatprep.subr.mxu0 0.0
    %621 = vmatpush2.msra.mxu0 0.0
    %622 = vmatprep.mubr.f32.mxu0 0.0
    %623 = vmatmul.mubr.f32.gmra.mxu0 %v122
    %v624 = vpop.f32.mrf.mxu0
    %v625 = vadd.f32 0.0, %v624
    %v626 = vpop.f32.mrf.mxu0
    %627 = vmatprep.mubr.f32.mxu0 0.0
    %628 = vmatmul.mubr.f32.gmra.mxu0 %v123
    %v629 = vpop.f32.mrf.mxu0
    %v630 = vadd.f32 0.0, %v629
    %v631 = vpop.f32.mrf.mxu0
    %632 = vmatprep.mubr.f32.mxu0 0.0
    %633 = vmatmul.mubr.f32.gmra.mxu0 %v124
    %v634 = vpop.f32.mrf.mxu0
    %v635 = vadd.f32 0.0, %v634
    %v636 = vpop.f32.mrf.mxu0
    %637 = vmatprep.mubr.f32.mxu0 0.0
    %638 = vmatmul.mubr.f32.gmra.mxu0 %v125
    %v639 = vpop.f32.mrf.mxu0
    %v640 = vadd.f32 0.0, %v639
    %v641 = vpop.f32.mrf.mxu0
    %642 = vmatprep.mubr.f32.mxu0 0.0
    %643 = vmatmul.mubr.f32.gmra.mxu0 %v126
    %v644 = vpop.f32.mrf.mxu0
    %v645 = vadd.f32 0.0, %v644
    %v646 = vpop.f32.mrf.mxu0
    %647 = vmatprep.mubr.f32.mxu0 0.0
    %648 = vmatmul.mubr.f32.gmra.mxu0 %v127
    %v649 = vpop.f32.mrf.mxu0
    %v650 = vadd.f32 0.0, %v649
    %v651 = vpop.f32.mrf.mxu0
    %652 = vmatprep.mubr.f32.mxu0 0.0
    %653 = vmatmul.mubr.f32.gmra.mxu0 %v128
    %v654 = vpop.f32.mrf.mxu0
    %v655 = vadd.f32 0.0, %v654
    %v656 = vpop.f32.mrf.mxu0
    %657 = vmatprep.mubr.f32.mxu0 0.0
    %658 = vmatmul.mubr.f32.gmra.mxu0 %v129
    %v659 = vpop.f32.mrf.mxu0
    %v660 = vadd.f32 0.0, %v659
    %v661 = vpop.f32.mrf.mxu0
    %662 = vmatprep.mubr.f32.mxu0 0.0
    %663 = vmatmul.mubr.f32.gmra.mxu0 %v130
    %v664 = vpop.f32.mrf.mxu0
    %v665 = vadd.f32 0.0, %v664
    %v666 = vpop.f32.mrf.mxu0
    %667 = vmatprep.mubr.f32.mxu0 0.0
    %668 = vmatmul.mubr.f32.gmra.mxu0 %v131
    %v669 = vpop.f32.mrf.mxu0
    %v670 = vadd.f32 0.0, %v669
    %v671 = vpop.f32.mrf.mxu0
    %672 = vmatprep.mubr.f32.mxu0 0.0
    %673 = vmatmul.mubr.f32.gmra.mxu0 %v132
    %v674 = vpop.f32.mrf.mxu0
    %v675 = vadd.f32 0.0, %v674
    %v676 = vpop.f32.mrf.mxu0
    %677 = vmatprep.mubr.f32.mxu0 0.0
    %678 = vmatmul.mubr.f32.gmra.mxu0 %v133
    %v679 = vpop.f32.mrf.mxu0
    %v680 = vadd.f32 0.0, %v679
    %v681 = vpop.f32.mrf.mxu0
    %682 = vmatprep.mubr.f32.mxu0 0.0
    %683 = vmatmul.mubr.f32.gmra.mxu0 %v134
    %v684 = vpop.f32.mrf.mxu0
    %v685 = vadd.f32 0.0, %v684
    %v686 = vpop.f32.mrf.mxu0
    %687 = vmatprep.mubr.f32.mxu0 0.0
    %688 = vmatmul.mubr.f32.gmra.mxu0 %v135
    %v689 = vpop.f32.mrf.mxu0
    %v690 = vadd.f32 0.0, %v689
    %v691 = vpop.f32.mrf.mxu0
    %692 = vmatprep.mubr.f32.mxu0 0.0
    %693 = vmatmul.mubr.f32.gmra.mxu0 %v136
    %v694 = vpop.f32.mrf.mxu0
    %v695 = vadd.f32 0.0, %v694
    %v696 = vpop.f32.mrf.mxu0
    %697 = vmatprep.mubr.f32.mxu0 0.0
    %698 = vmatmul.mubr.f32.gmra.mxu0 %v137
    %v699 = vpop.f32.mrf.mxu0
    %v700 = vadd.f32 0.0, %v699
    %v701 = vpop.f32.mrf.mxu0
    %702 = vdwg.mxu0
    %v703 = vmul.f32 %v283, %v625
    %v704 = vmul.f32 %v283, %v630
    %v705 = vmul.f32 %v283, %v635
    %v706 = vmul.f32 %v283, %v640
    %v707 = vmul.f32 %v283, %v645
    %v708 = vmul.f32 %v283, %v650
    %v709 = vmul.f32 %v283, %v655
    %v710 = vmul.f32 %v283, %v660
    %v711 = vmul.f32 %v283, %v665
    %v712 = vmul.f32 %v283, %v670
    %v713 = vmul.f32 %v283, %v675
    %v714 = vmul.f32 %v283, %v680
    %v715 = vmul.f32 %v283, %v685
    %v716 = vmul.f32 %v283, %v690
    %v717 = vmul.f32 %v283, %v695
    %v718 = vmul.f32 %v283, %v700
    %v719 = vmul.f32 %v300, %v542
    %v720 = vmul.f32 %v300, %v543
    %v721 = vmul.f32 %v300, %v544
    %v722 = vmul.f32 %v300, %v545
    %v723 = vmul.f32 %v300, %v546
    %v724 = vmul.f32 %v300, %v547
    %v725 = vmul.f32 %v300, %v548
    %v726 = vmul.f32 %v300, %v549
    %v727 = vmul.f32 %v300, %v550
    %v728 = vmul.f32 %v300, %v551
    %v729 = vmul.f32 %v300, %v552
    %v730 = vmul.f32 %v300, %v553
    %v731 = vmul.f32 %v300, %v554
    %v732 = vmul.f32 %v300, %v555
    %v733 = vmul.f32 %v300, %v556
    %v734 = vmul.f32 %v300, %v557
    %v735 = vadd.f32 %v703, %v719
    %v736 = vadd.f32 %v704, %v720
    %v737 = vadd.f32 %v705, %v721
    %v738 = vadd.f32 %v706, %v722
    %v739 = vadd.f32 %v707, %v723
    %v740 = vadd.f32 %v708, %v724
    %v741 = vadd.f32 %v709, %v725
    %v742 = vadd.f32 %v710, %v726
    %v743 = vadd.f32 %v711, %v727
    %v744 = vadd.f32 %v712, %v728
    %v745 = vadd.f32 %v713, %v729
    %v746 = vadd.f32 %v714, %v730
    %v747 = vadd.f32 %v715, %v731
    %v748 = vadd.f32 %v716, %v732
    %v749 = vadd.f32 %v717, %v733
    %v750 = vadd.f32 %v718, %v734
    %v751 = vadd.f32 %v735, %v90
    %v752 = vadd.f32 %v736, %v91
    %v753 = vadd.f32 %v737, %v92
    %v754 = vadd.f32 %v738, %v93
    %v755 = vadd.f32 %v739, %v94
    %v756 = vadd.f32 %v740, %v95
    %v757 = vadd.f32 %v741, %v96
    %v758 = vadd.f32 %v742, %v97
    %v759 = vadd.f32 %v743, %v98
    %v760 = vadd.f32 %v744, %v99
    %v761 = vadd.f32 %v745, %v100
    %v762 = vadd.f32 %v746, %v101
    %v763 = vadd.f32 %v747, %v102
    %v764 = vadd.f32 %v748, %v103
    %v765 = vadd.f32 %v749, %v104
    %v766 = vadd.f32 %v750, %v105
    %767 = vmatprep.subr.mxu0 0.0
    %768 = vmatpush1.msra.mxu0 %v766
    %769 = vmatprep.subr.mxu0 0.0
    %770 = vmatpush1.msra.mxu0 %v765
    %771 = vmatprep.subr.mxu0 0.0
    %772 = vmatpush1.msra.mxu0 %v764
    %773 = vmatprep.subr.mxu0 0.0
    %774 = vmatpush1.msra.mxu0 %v763
    %775 = vmatprep.subr.mxu0 0.0
    %776 = vmatpush1.msra.mxu0 %v762
    %777 = vmatprep.subr.mxu0 0.0
    %778 = vmatpush1.msra.mxu0 %v761
    %779 = vmatprep.subr.mxu0 0.0
    %780 = vmatpush1.msra.mxu0 %v760
    %781 = vmatprep.subr.mxu0 0.0
    %782 = vmatpush1.msra.mxu0 %v759
    %783 = vmatprep.subr.mxu0 0.0
    %784 = vmatpush1.msra.mxu0 %v758
    %785 = vmatprep.subr.mxu0 0.0
    %786 = vmatpush1.msra.mxu0 %v757
    %787 = vmatprep.subr.mxu0 0.0
    %788 = vmatpush1.msra.mxu0 %v756
    %789 = vmatprep.subr.mxu0 0.0
    %790 = vmatpush1.msra.mxu0 %v755
    %791 = vmatprep.subr.mxu0 0.0
    %792 = vmatpush1.msra.mxu0 %v754
    %793 = vmatprep.subr.mxu0 0.0
    %794 = vmatpush1.msra.mxu0 %v753
    %795 = vmatprep.subr.mxu0 0.0
    %796 = vmatpush1.msra.mxu0 %v752
    %797 = vmatprep.subr.mxu0 0.0
    %798 = vmatpush1.msra.mxu0 %v751
    %799 = vmatprep.subr.mxu0 0.0
    %800 = vmatpush2.msra.mxu0 0.0
    %801 = vmatprep.subr.mxu0 0.0
    %802 = vmatpush2.msra.mxu0 0.0
    %803 = vmatprep.subr.mxu0 0.0
    %804 = vmatpush2.msra.mxu0 0.0
    %805 = vmatprep.subr.mxu0 0.0
    %806 = vmatpush2.msra.mxu0 0.0
    %807 = vmatprep.subr.mxu0 0.0
    %808 = vmatpush2.msra.mxu0 0.0
    %809 = vmatprep.subr.mxu0 0.0
    %810 = vmatpush2.msra.mxu0 0.0
    %811 = vmatprep.subr.mxu0 0.0
    %812 = vmatpush2.msra.mxu0 0.0
    %813 = vmatprep.subr.mxu0 0.0
    %814 = vmatpush2.msra.mxu0 0.0
    %815 = vmatprep.subr.mxu0 0.0
    %816 = vmatpush2.msra.mxu0 0.0
    %817 = vmatprep.subr.mxu0 0.0
    %818 = vmatpush2.msra.mxu0 0.0
    %819 = vmatprep.subr.mxu0 0.0
    %820 = vmatpush2.msra.mxu0 0.0
    %821 = vmatprep.subr.mxu0 0.0
    %822 = vmatpush2.msra.mxu0 0.0
    %823 = vmatprep.subr.mxu0 0.0
    %824 = vmatpush2.msra.mxu0 0.0
    %825 = vmatprep.subr.mxu0 0.0
    %826 = vmatpush2.msra.mxu0 0.0
    %827 = vmatprep.subr.mxu0 0.0
    %828 = vmatpush2.msra.mxu0 0.0
    %829 = vmatprep.subr.mxu0 0.0
    %830 = vmatpush2.msra.mxu0 0.0
    %831 = vmatprep.mubr.f32.mxu0 0.0
    %832 = vmatmul.mubr.f32.gmra.mxu0 %v122
    %v833 = vpop.f32.mrf.mxu0
    %v834 = vadd.f32 0.0, %v833
    %v835 = vpop.f32.mrf.mxu0
    %836 = vmatprep.mubr.f32.mxu0 0.0
    %837 = vmatmul.mubr.f32.gmra.mxu0 %v123
    %v838 = vpop.f32.mrf.mxu0
    %v839 = vadd.f32 0.0, %v838
    %v840 = vpop.f32.mrf.mxu0
    %841 = vmatprep.mubr.f32.mxu0 0.0
    %842 = vmatmul.mubr.f32.gmra.mxu0 %v124
    %v843 = vpop.f32.mrf.mxu0
    %v844 = vadd.f32 0.0, %v843
    %v845 = vpop.f32.mrf.mxu0
    %846 = vmatprep.mubr.f32.mxu0 0.0
    %847 = vmatmul.mubr.f32.gmra.mxu0 %v125
    %v848 = vpop.f32.mrf.mxu0
    %v849 = vadd.f32 0.0, %v848
    %v850 = vpop.f32.mrf.mxu0
    %851 = vmatprep.mubr.f32.mxu0 0.0
    %852 = vmatmul.mubr.f32.gmra.mxu0 %v126
    %v853 = vpop.f32.mrf.mxu0
    %v854 = vadd.f32 0.0, %v853
    %v855 = vpop.f32.mrf.mxu0
    %856 = vmatprep.mubr.f32.mxu0 0.0
    %857 = vmatmul.mubr.f32.gmra.mxu0 %v127
    %v858 = vpop.f32.mrf.mxu0
    %v859 = vadd.f32 0.0, %v858
    %v860 = vpop.f32.mrf.mxu0
    %861 = vmatprep.mubr.f32.mxu0 0.0
    %862 = vmatmul.mubr.f32.gmra.mxu0 %v128
    %v863 = vpop.f32.mrf.mxu0
    %v864 = vadd.f32 0.0, %v863
    %v865 = vpop.f32.mrf.mxu0
    %866 = vmatprep.mubr.f32.mxu0 0.0
    %867 = vmatmul.mubr.f32.gmra.mxu0 %v129
    %v868 = vpop.f32.mrf.mxu0
    %v869 = vadd.f32 0.0, %v868
    %v870 = vpop.f32.mrf.mxu0
    %871 = vmatprep.mubr.f32.mxu0 0.0
    %872 = vmatmul.mubr.f32.gmra.mxu0 %v130
    %v873 = vpop.f32.mrf.mxu0
    %v874 = vadd.f32 0.0, %v873
    %v875 = vpop.f32.mrf.mxu0
    %876 = vmatprep.mubr.f32.mxu0 0.0
    %877 = vmatmul.mubr.f32.gmra.mxu0 %v131
    %v878 = vpop.f32.mrf.mxu0
    %v879 = vadd.f32 0.0, %v878
    %v880 = vpop.f32.mrf.mxu0
    %881 = vmatprep.mubr.f32.mxu0 0.0
    %882 = vmatmul.mubr.f32.gmra.mxu0 %v132
    %v883 = vpop.f32.mrf.mxu0
    %v884 = vadd.f32 0.0, %v883
    %v885 = vpop.f32.mrf.mxu0
    %886 = vmatprep.mubr.f32.mxu0 0.0
    %887 = vmatmul.mubr.f32.gmra.mxu0 %v133
    %v888 = vpop.f32.mrf.mxu0
    %v889 = vadd.f32 0.0, %v888
    %v890 = vpop.f32.mrf.mxu0
    %891 = vmatprep.mubr.f32.mxu0 0.0
    %892 = vmatmul.mubr.f32.gmra.mxu0 %v134
    %v893 = vpop.f32.mrf.mxu0
    %v894 = vadd.f32 0.0, %v893
    %v895 = vpop.f32.mrf.mxu0
    %896 = vmatprep.mubr.f32.mxu0 0.0
    %897 = vmatmul.mubr.f32.gmra.mxu0 %v135
    %v898 = vpop.f32.mrf.mxu0
    %v899 = vadd.f32 0.0, %v898
    %v900 = vpop.f32.mrf.mxu0
    %901 = vmatprep.mubr.f32.mxu0 0.0
    %902 = vmatmul.mubr.f32.gmra.mxu0 %v136
    %v903 = vpop.f32.mrf.mxu0
    %v904 = vadd.f32 0.0, %v903
    %v905 = vpop.f32.mrf.mxu0
    %906 = vmatprep.mubr.f32.mxu0 0.0
    %907 = vmatmul.mubr.f32.gmra.mxu0 %v137
    %v908 = vpop.f32.mrf.mxu0
    %v909 = vadd.f32 0.0, %v908
    %v910 = vpop.f32.mrf.mxu0
    %911 = vdwg.mxu0
    %v912 = vmul.f32 %v283, %v834
    %v913 = vmul.f32 %v283, %v839
    %v914 = vmul.f32 %v283, %v844
    %v915 = vmul.f32 %v283, %v849
    %v916 = vmul.f32 %v283, %v854
    %v917 = vmul.f32 %v283, %v859
    %v918 = vmul.f32 %v283, %v864
    %v919 = vmul.f32 %v283, %v869
    %v920 = vmul.f32 %v283, %v874
    %v921 = vmul.f32 %v283, %v879
    %v922 = vmul.f32 %v283, %v884
    %v923 = vmul.f32 %v283, %v889
    %v924 = vmul.f32 %v283, %v894
    %v925 = vmul.f32 %v283, %v899
    %v926 = vmul.f32 %v283, %v904
    %v927 = vmul.f32 %v283, %v909
    %v928 = vmul.f32 %v300, %v751
    %v929 = vmul.f32 %v300, %v752
    %v930 = vmul.f32 %v300, %v753
    %v931 = vmul.f32 %v300, %v754
    %v932 = vmul.f32 %v300, %v755
    %v933 = vmul.f32 %v300, %v756
    %v934 = vmul.f32 %v300, %v757
    %v935 = vmul.f32 %v300, %v758
    %v936 = vmul.f32 %v300, %v759
    %v937 = vmul.f32 %v300, %v760
    %v938 = vmul.f32 %v300, %v761
    %v939 = vmul.f32 %v300, %v762
    %v940 = vmul.f32 %v300, %v763
    %v941 = vmul.f32 %v300, %v764
    %v942 = vmul.f32 %v300, %v765
    %v943 = vmul.f32 %v300, %v766
    %v944 = vadd.f32 %v912, %v928
    %v945 = vadd.f32 %v913, %v929
    %v946 = vadd.f32 %v914, %v930
    %v947 = vadd.f32 %v915, %v931
    %v948 = vadd.f32 %v916, %v932
    %v949 = vadd.f32 %v917, %v933
    %v950 = vadd.f32 %v918, %v934
    %v951 = vadd.f32 %v919, %v935
    %v952 = vadd.f32 %v920, %v936
    %v953 = vadd.f32 %v921, %v937
    %v954 = vadd.f32 %v922, %v938
    %v955 = vadd.f32 %v923, %v939
    %v956 = vadd.f32 %v924, %v940
    %v957 = vadd.f32 %v925, %v941
    %v958 = vadd.f32 %v926, %v942
    %v959 = vadd.f32 %v927, %v943
    %v960 = vadd.f32 %v944, %v90
    %v961 = vadd.f32 %v945, %v91
    %v962 = vadd.f32 %v946, %v92
    %v963 = vadd.f32 %v947, %v93
    %v964 = vadd.f32 %v948, %v94
    %v965 = vadd.f32 %v949, %v95
    %v966 = vadd.f32 %v950, %v96
    %v967 = vadd.f32 %v951, %v97
    %v968 = vadd.f32 %v952, %v98
    %v969 = vadd.f32 %v953, %v99
    %v970 = vadd.f32 %v954, %v100
    %v971 = vadd.f32 %v955, %v101
    %v972 = vadd.f32 %v956, %v102
    %v973 = vadd.f32 %v957, %v103
    %v974 = vadd.f32 %v958, %v104
    %v975 = vadd.f32 %v959, %v105
    %976 = vst [vmem:[#allocation10] sm:$0xff] %v960
    %977 = vst [vmem:[#allocation10 + $0x8] sm:$0xff] %v961
    %978 = vst [vmem:[#allocation10 + $0x10] sm:$0xff] %v962
    %979 = vst [vmem:[#allocation10 + $0x18] sm:$0xff] %v963
    %980 = vst [vmem:[#allocation10 + $0x20] sm:$0xff] %v964
    %981 = vst [vmem:[#allocation10 + $0x28] sm:$0xff] %v965
    %982 = vst [vmem:[#allocation10 + $0x30] sm:$0xff] %v966
    %983 = vst [vmem:[#allocation10 + $0x38] sm:$0xff] %v967
    %984 = vst [vmem:[#allocation10 + $0x40] sm:$0xff] %v968
    %985 = vst [vmem:[#allocation10 + $0x48] sm:$0xff] %v969
    %986 = vst [vmem:[#allocation10 + $0x50] sm:$0xff] %v970
    %987 = vst [vmem:[#allocation10 + $0x58] sm:$0xff] %v971
    %988 = vst [vmem:[#allocation10 + $0x60] sm:$0xff] %v972
    %989 = vst [vmem:[#allocation10 + $0x68] sm:$0xff] %v973
    %990 = vst [vmem:[#allocation10 + $0x70] sm:$0xff] %v974
    %991 = vst [vmem:[#allocation10 + $0x78] sm:$0xff] %v975
    // Predicated region
    $region34: #{tpu_custom_call.1} parent=1 // pred_check
      _
    $region35: #{tpu_custom_call.1} parent=1 // pred_check_branch
      %993 = sbr.rel (0) target = $region37
    $region36: #{tpu_custom_call.1} parent=1 // pred_region
      %s995 = ssub.s32 2048, 2048
      %996 = vsyncadd [#allocation4], %s995
      %s997 = sshll.u32 [#allocation10], 4
      %s998 = int_to_ptr.vmem [resolvable:$true] %s997
      %1003 = dma.vmem_to_hbm [thread:$0]  %s998, 2048, %s4, [#allocation4], 128, 128, 8
    $region37: #{tpu_custom_call.1} parent=1 // pred_fallthru
      _
    // Predicated region
    $region38: #{tpu_custom_call.1} parent=1 // pred_check
      _
    $region39: #{tpu_custom_call.1} parent=1 // pred_check_branch
      %1005 = sbr.rel (0) target = $region41
    $region40: #{tpu_custom_call.1} parent=1 // pred_region
      %1006 = dma.done [#allocation4], 2048
    $region41: #{tpu_custom_call.1} parent=1 // pred_fallthru
      _
    %1007 = vsyncpa [#allocation3], 1
    %1008 = vsyncpa [#allocation8], 1
    %1009 = vsyncpa [#allocation4], 1
    %1010 = vsyncpa [#allocation5], 1

// kernel: tpu_custom_call.1
$region0: #{tpu_custom_call.1}
  #allocation0 [shape = 'u32[]', space=smem, size = 0x4, offset = 0x4, fixed_abs, tag = 'smem constant byte address 0x4 - core index']
  #allocation1 [shape = 'u32[144,128]{1,0:T(1,128)}', space=vmem, size = 0x12000, scoped, tag = 'internal scratch']
  %s0 = inlined_call_operand.hbm [shape: f32[2], index: 0, kind: input, shape index: {}]
  %s1 = inlined_call_operand.hbm [shape: f32[128,128], index: 1, kind: input, shape index: {}]
  %s2 = inlined_call_operand.hbm [shape: f32[128,128], index: 2, kind: input, shape index: {}]
  %s3 = inlined_call_operand.hbm [shape: f32[128,128], index: 3, kind: input, shape index: {}]
  %s4 = inlined_call_operand.hbm [shape: f32[128,128], index: 4, kind: output, shape index: {}]
  %s5 = sld [smem:[#allocation0]]
  $region42: #{tpu_custom_call.1} parent=0
    _
  %s7 = ssub.s32 1, %s5
  %s8 = scalar_select 0, %s7, %s5
  $region1: #{tpu_custom_call.1} parent=0
    #allocation2 [shape = 'u8[512]{0}', space=smem, size = 0x200, scoped, tag = 'input window, operand 0, single buffered']
    #allocation3 [shape = 's32[1]{0}', space=sflag, size = 0x4, scoped, tag = 'scoped memory for tpu_custom_call.1']
    #allocation4 [shape = 's32[1]{0}', space=sflag, size = 0x4, scoped, tag = 'scoped memory for tpu_custom_call.1']
    #allocation5 [shape = 's32[1]{0}', space=sflag, size = 0x4, scoped, tag = 'scoped memory for tpu_custom_call.1']
    #allocation6 [shape = 'u8[65536]{0}', space=vmem, size = 0x10000, scoped, tag = 'input window, operand 1, single buffered']
    #allocation7 [shape = 'u8[65536]{0}', space=vmem, size = 0x10000, scoped, tag = 'input window, operand 2, single buffered']
    #allocation8 [shape = 's32[1]{0}', space=sflag, size = 0x4, scoped, tag = 'scoped memory for tpu_custom_call.1']
    #allocation9 [shape = 'u8[65536]{0}', space=vmem, size = 0x10000, scoped, tag = 'input window, operand 3, single buffered']
    #allocation10 [shape = 'u8[65536]{0}', space=vmem, size = 0x10000, scoped, tag = 'output window, operand 0, single buffered']
    %9 = vsyncpa [#allocation5], 0
    %10 = vsyncpa [#allocation3], 0
    %11 = vsyncpa [#allocation8], 0
    %12 = vsyncpa [#allocation4], 0
    // Predicated region
    $region2: #{tpu_custom_call.1} parent=1 // pred_check
      _
    $region3: #{tpu_custom_call.1} parent=1 // pred_check_branch
      %14 = sbr.rel (0) target = $region5
    $region4: #{tpu_custom_call.1} parent=1 // pred_region
      %s16 = ssub.s32 16, 16
      %17 = vsyncadd [#allocation5], %s16
      %20 = dma.hbm_to_smem %s0, 16, [#allocation2], [#allocation5]
    $region5: #{tpu_custom_call.1} parent=1 // pred_fallthru
      _
    // Predicated region
    $region6: #{tpu_custom_call.1} parent=1 // pred_check
      _
    $region7: #{tpu_custom_call.1} parent=1 // pred_check_branch
      %22 = sbr.rel (0) target = $region9
    $region8: #{tpu_custom_call.1} parent=1 // pred_region
      %s24 = ssub.s32 2048, 2048
      %25 = vsyncadd [#allocation3], %s24
      %s26 = sshll.u32 [#allocation6], 4
      %s27 = int_to_ptr.vmem [resolvable:$true] %s26
      %32 = dma.hbm_to_vmem [thread:$0]  %s1, 2048, %s27, [#allocation3], 128, 128, 8
    $region9: #{tpu_custom_call.1} parent=1 // pred_fallthru
      _
    // Predicated region
    $region10: #{tpu_custom_call.1} parent=1 // pred_check
      _
    $region11: #{tpu_custom_call.1} parent=1 // pred_check_branch
      %34 = sbr.rel (0) target = $region13
    $region12: #{tpu_custom_call.1} parent=1 // pred_region
      %s36 = ssub.s32 2048, 2048
      %37 = vsyncadd [#allocation8], %s36
      %s38 = sshll.u32 [#allocation7], 4
      %s39 = int_to_ptr.vmem [resolvable:$true] %s38
      %44 = dma.hbm_to_vmem [thread:$0]  %s2, 2048, %s39, [#allocation8], 128, 128, 8
    $region13: #{tpu_custom_call.1} parent=1 // pred_fallthru
      _
    // Predicated region
    $region14: #{tpu_custom_call.1} parent=1 // pred_check
      _
    $region15: #{tpu_custom_call.1} parent=1 // pred_check_branch
      %46 = sbr.rel (0) target = $region17
    $region16: #{tpu_custom_call.1} parent=1 // pred_region
      %s48 = ssub.s32 2048, 2048
      %49 = vsyncadd [#allocation8], %s48
      %s50 = sshll.u32 [#allocation9], 4
      %s51 = int_to_ptr.vmem [resolvable:$true] %s50
      %56 = dma.hbm_to_vmem [thread:$0]  %s3, 2048, %s51, [#allocation8], 128, 128, 8
    $region17: #{tpu_custom_call.1} parent=1 // pred_fallthru
      _
    // Predicated region
    $region18: #{tpu_custom_call.1} parent=1 // pred_check
      _
    $region19: #{tpu_custom_call.1} parent=1 // pred_check_branch
      %58 = sbr.rel (0) target = $region21
    $region20: #{tpu_custom_call.1} parent=1 // pred_region
      %59 = dma.done [#allocation5], 16
    $region21: #{tpu_custom_call.1} parent=1 // pred_fallthru
      _
    // Predicated region
    $region22: #{tpu_custom_call.1} parent=1 // pred_check
      _
    $region23: #{tpu_custom_call.1} parent=1 // pred_check_branch
      %61 = sbr.rel (0) target = $region25
    $region24: #{tpu_custom_call.1} parent=1 // pred_region
      %62 = dma.done [#allocation3], 2048
    $region25: #{tpu_custom_call.1} parent=1 // pred_fallthru
      _
    // Predicated region
    $region26: #{tpu_custom_call.1} parent=1 // pred_check
      _
    $region27: #{tpu_custom_call.1} parent=1 // pred_check_branch
      %64 = sbr.rel (0) target = $region29
    $region28: #{tpu_custom_call.1} parent=1 // pred_region
      %65 = dma.done [#allocation8], 2048
    $region29: #{tpu_custom_call.1} parent=1 // pred_fallthru
      _
    // Predicated region
    $region30: #{tpu_custom_call.1} parent=1 // pred_check
      _
    $region31: #{tpu_custom_call.1} parent=1 // pred_check_branch
      %67 = sbr.rel (0) target = $region33
    $region32: #{tpu_custom_call.1} parent=1 // pred_region
      %68 = dma.done [#allocation8], 2048
    $region33: #{tpu_custom_call.1} parent=1 // pred_fallthru
      _
    %69 = sfence
    %s70 = sld [smem:[#allocation2]]
    %s71 = sld [smem:[#allocation2 + $0x1]]
    %s72 = ssub.f32 1.0, %s70
    %v73 = vld [vmem:[#allocation9] sm:$0xff]
    %v74 = vld [vmem:[#allocation9 + $0x8] sm:$0xff]
    %v75 = vld [vmem:[#allocation9 + $0x10] sm:$0xff]
    %v76 = vld [vmem:[#allocation9 + $0x18] sm:$0xff]
    %v77 = vld [vmem:[#allocation9 + $0x20] sm:$0xff]
    %v78 = vld [vmem:[#allocation9 + $0x28] sm:$0xff]
    %v79 = vld [vmem:[#allocation9 + $0x30] sm:$0xff]
    %v80 = vld [vmem:[#allocation9 + $0x38] sm:$0xff]
    %v81 = vld [vmem:[#allocation9 + $0x40] sm:$0xff]
    %v82 = vld [vmem:[#allocation9 + $0x48] sm:$0xff]
    %v83 = vld [vmem:[#allocation9 + $0x50] sm:$0xff]
    %v84 = vld [vmem:[#allocation9 + $0x58] sm:$0xff]
    %v85 = vld [vmem:[#allocation9 + $0x60] sm:$0xff]
    %v86 = vld [vmem:[#allocation9 + $0x68] sm:$0xff]
    %v87 = vld [vmem:[#allocation9 + $0x70] sm:$0xff]
    %v88 = vld [vmem:[#allocation9 + $0x78] sm:$0xff]
    %v89 = vstv %s71
    %v90 = vmul.f32 %v89, %v73
    %v91 = vmul.f32 %v89, %v74
    %v92 = vmul.f32 %v89, %v75
    %v93 = vmul.f32 %v89, %v76
    %v94 = vmul.f32 %v89, %v77
    %v95 = vmul.f32 %v89, %v78
    %v96 = vmul.f32 %v89, %v79
    %v97 = vmul.f32 %v89, %v80
    %v98 = vmul.f32 %v89, %v81
    %v99 = vmul.f32 %v89, %v82
    %v100 = vmul.f32 %v89, %v83
    %v101 = vmul.f32 %v89, %v84
    %v102 = vmul.f32 %v89, %v85
    %v103 = vmul.f32 %v89, %v86
    %v104 = vmul.f32 %v89, %v87
    %v105 = vmul.f32 %v89, %v88
    %v106 = vld [vmem:[#allocation7] sm:$0xff]
    %v107 = vld [vmem:[#allocation7 + $0x8] sm:$0xff]
    %v108 = vld [vmem:[#allocation7 + $0x10] sm:$0xff]
    %v109 = vld [vmem:[#allocation7 + $0x18] sm:$0xff]
    %v110 = vld [vmem:[#allocation7 + $0x20] sm:$0xff]
    %v111 = vld [vmem:[#allocation7 + $0x28] sm:$0xff]
    %v112 = vld [vmem:[#allocation7 + $0x30] sm:$0xff]
    %v113 = vld [vmem:[#allocation7 + $0x38] sm:$0xff]
    %v114 = vld [vmem:[#allocation7 + $0x40] sm:$0xff]
    %v115 = vld [vmem:[#allocation7 + $0x48] sm:$0xff]
    %v116 = vld [vmem:[#allocation7 + $0x50] sm:$0xff]
    %v117 = vld [vmem:[#allocation7 + $0x58] sm:$0xff]
    %v118 = vld [vmem:[#allocation7 + $0x60] sm:$0xff]
    %v119 = vld [vmem:[#allocation7 + $0x68] sm:$0xff]
    %v120 = vld [vmem:[#allocation7 + $0x70] sm:$0xff]
    %v121 = vld [vmem:[#allocation7 + $0x78] sm:$0xff]
    %v122 = vld [vmem:[#allocation6] sm:$0xff]
    %v123 = vld [vmem:[#allocation6 + $0x8] sm:$0xff]
    %v124 = vld [vmem:[#allocation6 + $0x10] sm:$0xff]
    %v125 = vld [vmem:[#allocation6 + $0x18] sm:$0xff]
    %v126 = vld [vmem:[#allocation6 + $0x20] sm:$0xff]
    %v127 = vld [vmem:[#allocation6 + $0x28] sm:$0xff]
    %v128 = vld [vmem:[#allocation6 + $0x30] sm:$0xff]
    %v129 = vld [vmem:[#allocation6 + $0x38] sm:$0xff]
    %v130 = vld [vmem:[#allocation6 + $0x40] sm:$0xff]
    %v131 = vld [vmem:[#allocation6 + $0x48] sm:$0xff]
    %v132 = vld [vmem:[#allocation6 + $0x50] sm:$0xff]
    %v133 = vld [vmem:[#allocation6 + $0x58] sm:$0xff]
    %v134 = vld [vmem:[#allocation6 + $0x60] sm:$0xff]
    %v135 = vld [vmem:[#allocation6 + $0x68] sm:$0xff]
    %v136 = vld [vmem:[#allocation6 + $0x70] sm:$0xff]
    %v137 = vld [vmem:[#allocation6 + $0x78] sm:$0xff]
    %138 = vmatprep.subr.mxu0 0.0
    %139 = vmatpush1.msra.mxu0 %v121
    %140 = vmatprep.subr.mxu0 0.0
    %141 = vmatpush1.msra.mxu0 %v120
    %142 = vmatprep.subr.mxu0 0.0
    %143 = vmatpush1.msra.mxu0 %v119
    %144 = vmatprep.subr.mxu0 0.0
    %145 = vmatpush1.msra.mxu0 %v118
    %146 = vmatprep.subr.mxu0 0.0
    %147 = vmatpush1.msra.mxu0 %v117
    %148 = vmatprep.subr.mxu0 0.0
    %149 = vmatpush1.msra.mxu0 %v116
    %150 = vmatprep.subr.mxu0 0.0
    %151 = vmatpush1.msra.mxu0 %v115
    %152 = vmatprep.subr.mxu0 0.0
    %153 = vmatpush1.msra.mxu0 %v114
    %154 = vmatprep.subr.mxu0 0.0
    %155 = vmatpush1.msra.mxu0 %v113
    %156 = vmatprep.subr.mxu0 0.0
    %157 = vmatpush1.msra.mxu0 %v112
    %158 = vmatprep.subr.mxu0 0.0
    %159 = vmatpush1.msra.mxu0 %v111
    %160 = vmatprep.subr.mxu0 0.0
    %161 = vmatpush1.msra.mxu0 %v110
    %162 = vmatprep.subr.mxu0 0.0
    %163 = vmatpush1.msra.mxu0 %v109
    %164 = vmatprep.subr.mxu0 0.0
    %165 = vmatpush1.msra.mxu0 %v108
    %166 = vmatprep.subr.mxu0 0.0
    %167 = vmatpush1.msra.mxu0 %v107
    %168 = vmatprep.subr.mxu0 0.0
    %169 = vmatpush1.msra.mxu0 %v106
    %170 = vmatprep.subr.mxu0 0.0
    %171 = vmatpush2.msra.mxu0 0.0
    %172 = vmatprep.subr.mxu0 0.0
    %173 = vmatpush2.msra.mxu0 0.0
    %174 = vmatprep.subr.mxu0 0.0
    %175 = vmatpush2.msra.mxu0 0.0
    %176 = vmatprep.subr.mxu0 0.0
    %177 = vmatpush2.msra.mxu0 0.0
    %178 = vmatprep.subr.mxu0 0.0
    %179 = vmatpush2.msra.mxu0 0.0
    %180 = vmatprep.subr.mxu0 0.0
    %181 = vmatpush2.msra.mxu0 0.0
    %182 = vmatprep.subr.mxu0 0.0
    %183 = vmatpush2.msra.mxu0 0.0
    %184 = vmatprep.subr.mxu0 0.0
    %185 = vmatpush2.msra.mxu0 0.0
    %186 = vmatprep.subr.mxu0 0.0
    %187 = vmatpush2.msra.mxu0 0.0
    %188 = vmatprep.subr.mxu0 0.0
    %189 = vmatpush2.msra.mxu0 0.0
    %190 = vmatprep.subr.mxu0 0.0
    %191 = vmatpush2.msra.mxu0 0.0
    %192 = vmatprep.subr.mxu0 0.0
    %193 = vmatpush2.msra.mxu0 0.0
    %194 = vmatprep.subr.mxu0 0.0
    %195 = vmatpush2.msra.mxu0 0.0
    %196 = vmatprep.subr.mxu0 0.0
    %197 = vmatpush2.msra.mxu0 0.0
    %198 = vmatprep.subr.mxu0 0.0
    %199 = vmatpush2.msra.mxu0 0.0
    %200 = vmatprep.subr.mxu0 0.0
    %201 = vmatpush2.msra.mxu0 0.0
    %202 = vmatprep.mubr.f32.mxu0 0.0
    %203 = vmatmul.mubr.f32.gmra.mxu0 %v122
    %v204 = vpop.f32.mrf.mxu0
    %v205 = vadd.f32 0.0, %v204
    %v206 = vpop.f32.mrf.mxu0
    %207 = vmatprep.mubr.f32.mxu0 0.0
    %208 = vmatmul.mubr.f32.gmra.mxu0 %v123
    %v209 = vpop.f32.mrf.mxu0
    %v210 = vadd.f32 0.0, %v209
    %v211 = vpop.f32.mrf.mxu0
    %212 = vmatprep.mubr.f32.mxu0 0.0
    %213 = vmatmul.mubr.f32.gmra.mxu0 %v124
    %v214 = vpop.f32.mrf.mxu0
    %v215 = vadd.f32 0.0, %v214
    %v216 = vpop.f32.mrf.mxu0
    %217 = vmatprep.mubr.f32.mxu0 0.0
    %218 = vmatmul.mubr.f32.gmra.mxu0 %v125
    %v219 = vpop.f32.mrf.mxu0
    %v220 = vadd.f32 0.0, %v219
    %v221 = vpop.f32.mrf.mxu0
    %222 = vmatprep.mubr.f32.mxu0 0.0
    %223 = vmatmul.mubr.f32.gmra.mxu0 %v126
    %v224 = vpop.f32.mrf.mxu0
    %v225 = vadd.f32 0.0, %v224
    %v226 = vpop.f32.mrf.mxu0
    %227 = vmatprep.mubr.f32.mxu0 0.0
    %228 = vmatmul.mubr.f32.gmra.mxu0 %v127
    %v229 = vpop.f32.mrf.mxu0
    %v230 = vadd.f32 0.0, %v229
    %v231 = vpop.f32.mrf.mxu0
    %232 = vmatprep.mubr.f32.mxu0 0.0
    %233 = vmatmul.mubr.f32.gmra.mxu0 %v128
    %v234 = vpop.f32.mrf.mxu0
    %v235 = vadd.f32 0.0, %v234
    %v236 = vpop.f32.mrf.mxu0
    %237 = vmatprep.mubr.f32.mxu0 0.0
    %238 = vmatmul.mubr.f32.gmra.mxu0 %v129
    %v239 = vpop.f32.mrf.mxu0
    %v240 = vadd.f32 0.0, %v239
    %v241 = vpop.f32.mrf.mxu0
    %242 = vmatprep.mubr.f32.mxu0 0.0
    %243 = vmatmul.mubr.f32.gmra.mxu0 %v130
    %v244 = vpop.f32.mrf.mxu0
    %v245 = vadd.f32 0.0, %v244
    %v246 = vpop.f32.mrf.mxu0
    %247 = vmatprep.mubr.f32.mxu0 0.0
    %248 = vmatmul.mubr.f32.gmra.mxu0 %v131
    %v249 = vpop.f32.mrf.mxu0
    %v250 = vadd.f32 0.0, %v249
    %v251 = vpop.f32.mrf.mxu0
    %252 = vmatprep.mubr.f32.mxu0 0.0
    %253 = vmatmul.mubr.f32.gmra.mxu0 %v132
    %v254 = vpop.f32.mrf.mxu0
    %v255 = vadd.f32 0.0, %v254
    %v256 = vpop.f32.mrf.mxu0
    %257 = vmatprep.mubr.f32.mxu0 0.0
    %258 = vmatmul.mubr.f32.gmra.mxu0 %v133
    %v259 = vpop.f32.mrf.mxu0
    %v260 = vadd.f32 0.0, %v259
    %v261 = vpop.f32.mrf.mxu0
    %262 = vmatprep.mubr.f32.mxu0 0.0
    %263 = vmatmul.mubr.f32.gmra.mxu0 %v134
    %v264 = vpop.f32.mrf.mxu0
    %v265 = vadd.f32 0.0, %v264
    %v266 = vpop.f32.mrf.mxu0
    %267 = vmatprep.mubr.f32.mxu0 0.0
    %268 = vmatmul.mubr.f32.gmra.mxu0 %v135
    %v269 = vpop.f32.mrf.mxu0
    %v270 = vadd.f32 0.0, %v269
    %v271 = vpop.f32.mrf.mxu0
    %272 = vmatprep.mubr.f32.mxu0 0.0
    %273 = vmatmul.mubr.f32.gmra.mxu0 %v136
    %v274 = vpop.f32.mrf.mxu0
    %v275 = vadd.f32 0.0, %v274
    %v276 = vpop.f32.mrf.mxu0
    %277 = vmatprep.mubr.f32.mxu0 0.0
    %278 = vmatmul.mubr.f32.gmra.mxu0 %v137
    %v279 = vpop.f32.mrf.mxu0
    %v280 = vadd.f32 0.0, %v279
    %v281 = vpop.f32.mrf.mxu0
    %282 = vdwg.mxu0
    %v283 = vstv %s70
    %v284 = vmul.f32 %v283, %v205
    %v285 = vmul.f32 %v283, %v210
    %v286 = vmul.f32 %v283, %v215
    %v287 = vmul.f32 %v283, %v220
    %v288 = vmul.f32 %v283, %v225
    %v289 = vmul.f32 %v283, %v230
    %v290 = vmul.f32 %v283, %v235
    %v291 = vmul.f32 %v283, %v240
    %v292 = vmul.f32 %v283, %v245
    %v293 = vmul.f32 %v283, %v250
    %v294 = vmul.f32 %v283, %v255
    %v295 = vmul.f32 %v283, %v260
    %v296 = vmul.f32 %v283, %v265
    %v297 = vmul.f32 %v283, %v270
    %v298 = vmul.f32 %v283, %v275
    %v299 = vmul.f32 %v283, %v280
    %v300 = vstv %s72
    %v301 = vmul.f32 %v300, %v106
    %v302 = vmul.f32 %v300, %v107
    %v303 = vmul.f32 %v300, %v108
    %v304 = vmul.f32 %v300, %v109
    %v305 = vmul.f32 %v300, %v110
    %v306 = vmul.f32 %v300, %v111
    %v307 = vmul.f32 %v300, %v112
    %v308 = vmul.f32 %v300, %v113
    %v309 = vmul.f32 %v300, %v114
    %v310 = vmul.f32 %v300, %v115
    %v311 = vmul.f32 %v300, %v116
    %v312 = vmul.f32 %v300, %v117
    %v313 = vmul.f32 %v300, %v118
    %v314 = vmul.f32 %v300, %v119
    %v315 = vmul.f32 %v300, %v120
    %v316 = vmul.f32 %v300, %v121
    %v317 = vadd.f32 %v284, %v301
    %v318 = vadd.f32 %v285, %v302
    %v319 = vadd.f32 %v286, %v303
    %v320 = vadd.f32 %v287, %v304
    %v321 = vadd.f32 %v288, %v305
    %v322 = vadd.f32 %v289, %v306
    %v323 = vadd.f32 %v290, %v307
    %v324 = vadd.f32 %v291, %v308
    %v325 = vadd.f32 %v292, %v309
    %v326 = vadd.f32 %v293, %v310
    %v327 = vadd.f32 %v294, %v311
    %v328 = vadd.f32 %v295, %v312
    %v329 = vadd.f32 %v296, %v313
    %v330 = vadd.f32 %v297, %v314
    %v331 = vadd.f32 %v298, %v315
    %v332 = vadd.f32 %v299, %v316
    %v333 = vadd.f32 %v317, %v90
    %v334 = vadd.f32 %v318, %v91
    %v335 = vadd.f32 %v319, %v92
    %v336 = vadd.f32 %v320, %v93
    %v337 = vadd.f32 %v321, %v94
    %v338 = vadd.f32 %v322, %v95
    %v339 = vadd.f32 %v323, %v96
    %v340 = vadd.f32 %v324, %v97
    %v341 = vadd.f32 %v325, %v98
    %v342 = vadd.f32 %v326, %v99
    %v343 = vadd.f32 %v327, %v100
    %v344 = vadd.f32 %v328, %v101
    %v345 = vadd.f32 %v329, %v102
    %v346 = vadd.f32 %v330, %v103
    %v347 = vadd.f32 %v331, %v104
    %v348 = vadd.f32 %v332, %v105
    %349 = vmatprep.subr.mxu0 0.0
    %350 = vmatpush1.msra.mxu0 %v348
    %351 = vmatprep.subr.mxu0 0.0
    %352 = vmatpush1.msra.mxu0 %v347
    %353 = vmatprep.subr.mxu0 0.0
    %354 = vmatpush1.msra.mxu0 %v346
    %355 = vmatprep.subr.mxu0 0.0
    %356 = vmatpush1.msra.mxu0 %v345
    %357 = vmatprep.subr.mxu0 0.0
    %358 = vmatpush1.msra.mxu0 %v344
    %359 = vmatprep.subr.mxu0 0.0
    %360 = vmatpush1.msra.mxu0 %v343
    %361 = vmatprep.subr.mxu0 0.0
    %362 = vmatpush1.msra.mxu0 %v342
    %363 = vmatprep.subr.mxu0 0.0
    %364 = vmatpush1.msra.mxu0 %v341
    %365 = vmatprep.subr.mxu0 0.0
    %366 = vmatpush1.msra.mxu0 %v340
    %367 = vmatprep.subr.mxu0 0.0
    %368 = vmatpush1.msra.mxu0 %v339
    %369 = vmatprep.subr.mxu0 0.0
    %370 = vmatpush1.msra.mxu0 %v338
    %371 = vmatprep.subr.mxu0 0.0
    %372 = vmatpush1.msra.mxu0 %v337
    %373 = vmatprep.subr.mxu0 0.0
    %374 = vmatpush1.msra.mxu0 %v336
    %375 = vmatprep.subr.mxu0 0.0
    %376 = vmatpush1.msra.mxu0 %v335
    %377 = vmatprep.subr.mxu0 0.0
    %378 = vmatpush1.msra.mxu0 %v334
    %379 = vmatprep.subr.mxu0 0.0
    %380 = vmatpush1.msra.mxu0 %v333
    %381 = vmatprep.subr.mxu0 0.0
    %382 = vmatpush2.msra.mxu0 0.0
    %383 = vmatprep.subr.mxu0 0.0
    %384 = vmatpush2.msra.mxu0 0.0
    %385 = vmatprep.subr.mxu0 0.0
    %386 = vmatpush2.msra.mxu0 0.0
    %387 = vmatprep.subr.mxu0 0.0
    %388 = vmatpush2.msra.mxu0 0.0
    %389 = vmatprep.subr.mxu0 0.0
    %390 = vmatpush2.msra.mxu0 0.0
    %391 = vmatprep.subr.mxu0 0.0
    %392 = vmatpush2.msra.mxu0 0.0
    %393 = vmatprep.subr.mxu0 0.0
    %394 = vmatpush2.msra.mxu0 0.0
    %395 = vmatprep.subr.mxu0 0.0
    %396 = vmatpush2.msra.mxu0 0.0
    %397 = vmatprep.subr.mxu0 0.0
    %398 = vmatpush2.msra.mxu0 0.0
    %399 = vmatprep.subr.mxu0 0.0
    %400 = vmatpush2.msra.mxu0 0.0
    %401 = vmatprep.subr.mxu0 0.0
    %402 = vmatpush2.msra.mxu0 0.0
    %403 = vmatprep.subr.mxu0 0.0
    %404 = vmatpush2.msra.mxu0 0.0
    %405 = vmatprep.subr.mxu0 0.0
    %406 = vmatpush2.msra.mxu0 0.0
    %407 = vmatprep.subr.mxu0 0.0
    %408 = vmatpush2.msra.mxu0 0.0
    %409 = vmatprep.subr.mxu0 0.0
    %410 = vmatpush2.msra.mxu0 0.0
    %411 = vmatprep.subr.mxu0 0.0
    %412 = vmatpush2.msra.mxu0 0.0
    %413 = vmatprep.mubr.f32.mxu0 0.0
    %414 = vmatmul.mubr.f32.gmra.mxu0 %v122
    %v415 = vpop.f32.mrf.mxu0
    %v416 = vadd.f32 0.0, %v415
    %v417 = vpop.f32.mrf.mxu0
    %418 = vmatprep.mubr.f32.mxu0 0.0
    %419 = vmatmul.mubr.f32.gmra.mxu0 %v123
    %v420 = vpop.f32.mrf.mxu0
    %v421 = vadd.f32 0.0, %v420
    %v422 = vpop.f32.mrf.mxu0
    %423 = vmatprep.mubr.f32.mxu0 0.0
    %424 = vmatmul.mubr.f32.gmra.mxu0 %v124
    %v425 = vpop.f32.mrf.mxu0
    %v426 = vadd.f32 0.0, %v425
    %v427 = vpop.f32.mrf.mxu0
    %428 = vmatprep.mubr.f32.mxu0 0.0
    %429 = vmatmul.mubr.f32.gmra.mxu0 %v125
    %v430 = vpop.f32.mrf.mxu0
    %v431 = vadd.f32 0.0, %v430
    %v432 = vpop.f32.mrf.mxu0
    %433 = vmatprep.mubr.f32.mxu0 0.0
    %434 = vmatmul.mubr.f32.gmra.mxu0 %v126
    %v435 = vpop.f32.mrf.mxu0
    %v436 = vadd.f32 0.0, %v435
    %v437 = vpop.f32.mrf.mxu0
    %438 = vmatprep.mubr.f32.mxu0 0.0
    %439 = vmatmul.mubr.f32.gmra.mxu0 %v127
    %v440 = vpop.f32.mrf.mxu0
    %v441 = vadd.f32 0.0, %v440
    %v442 = vpop.f32.mrf.mxu0
    %443 = vmatprep.mubr.f32.mxu0 0.0
    %444 = vmatmul.mubr.f32.gmra.mxu0 %v128
    %v445 = vpop.f32.mrf.mxu0
    %v446 = vadd.f32 0.0, %v445
    %v447 = vpop.f32.mrf.mxu0
    %448 = vmatprep.mubr.f32.mxu0 0.0
    %449 = vmatmul.mubr.f32.gmra.mxu0 %v129
    %v450 = vpop.f32.mrf.mxu0
    %v451 = vadd.f32 0.0, %v450
    %v452 = vpop.f32.mrf.mxu0
    %453 = vmatprep.mubr.f32.mxu0 0.0
    %454 = vmatmul.mubr.f32.gmra.mxu0 %v130
    %v455 = vpop.f32.mrf.mxu0
    %v456 = vadd.f32 0.0, %v455
    %v457 = vpop.f32.mrf.mxu0
    %458 = vmatprep.mubr.f32.mxu0 0.0
    %459 = vmatmul.mubr.f32.gmra.mxu0 %v131
    %v460 = vpop.f32.mrf.mxu0
    %v461 = vadd.f32 0.0, %v460
    %v462 = vpop.f32.mrf.mxu0
    %463 = vmatprep.mubr.f32.mxu0 0.0
    %464 = vmatmul.mubr.f32.gmra.mxu0 %v132
    %v465 = vpop.f32.mrf.mxu0
    %v466 = vadd.f32 0.0, %v465
    %v467 = vpop.f32.mrf.mxu0
    %468 = vmatprep.mubr.f32.mxu0 0.0
    %469 = vmatmul.mubr.f32.gmra.mxu0 %v133
    %v470 = vpop.f32.mrf.mxu0
    %v471 = vadd.f32 0.0, %v470
    %v472 = vpop.f32.mrf.mxu0
    %473 = vmatprep.mubr.f32.mxu0 0.0
    %474 = vmatmul.mubr.f32.gmra.mxu0 %v134
    %v475 = vpop.f32.mrf.mxu0
    %v476 = vadd.f32 0.0, %v475
    %v477 = vpop.f32.mrf.mxu0
    %478 = vmatprep.mubr.f32.mxu0 0.0
    %479 = vmatmul.mubr.f32.gmra.mxu0 %v135
    %v480 = vpop.f32.mrf.mxu0
    %v481 = vadd.f32 0.0, %v480
    %v482 = vpop.f32.mrf.mxu0
    %483 = vmatprep.mubr.f32.mxu0 0.0
    %484 = vmatmul.mubr.f32.gmra.mxu0 %v136
    %v485 = vpop.f32.mrf.mxu0
    %v486 = vadd.f32 0.0, %v485
    %v487 = vpop.f32.mrf.mxu0
    %488 = vmatprep.mubr.f32.mxu0 0.0
    %489 = vmatmul.mubr.f32.gmra.mxu0 %v137
    %v490 = vpop.f32.mrf.mxu0
    %v491 = vadd.f32 0.0, %v490
    %v492 = vpop.f32.mrf.mxu0
    %493 = vdwg.mxu0
    %v494 = vmul.f32 %v283, %v416
    %v495 = vmul.f32 %v283, %v421
    %v496 = vmul.f32 %v283, %v426
    %v497 = vmul.f32 %v283, %v431
    %v498 = vmul.f32 %v283, %v436
    %v499 = vmul.f32 %v283, %v441
    %v500 = vmul.f32 %v283, %v446
    %v501 = vmul.f32 %v283, %v451
    %v502 = vmul.f32 %v283, %v456
    %v503 = vmul.f32 %v283, %v461
    %v504 = vmul.f32 %v283, %v466
    %v505 = vmul.f32 %v283, %v471
    %v506 = vmul.f32 %v283, %v476
    %v507 = vmul.f32 %v283, %v481
    %v508 = vmul.f32 %v283, %v486
    %v509 = vmul.f32 %v283, %v491
    %v510 = vmul.f32 %v300, %v333
    %v511 = vmul.f32 %v300, %v334
    %v512 = vmul.f32 %v300, %v335
    %v513 = vmul.f32 %v300, %v336
    %v514 = vmul.f32 %v300, %v337
    %v515 = vmul.f32 %v300, %v338
    %v516 = vmul.f32 %v300, %v339
    %v517 = vmul.f32 %v300, %v340
    %v518 = vmul.f32 %v300, %v341
    %v519 = vmul.f32 %v300, %v342
    %v520 = vmul.f32 %v300, %v343
    %v521 = vmul.f32 %v300, %v344
    %v522 = vmul.f32 %v300, %v345
    %v523 = vmul.f32 %v300, %v346
    %v524 = vmul.f32 %v300, %v347
    %v525 = vmul.f32 %v300, %v348
    %v526 = vadd.f32 %v494, %v510
    %v527 = vadd.f32 %v495, %v511
    %v528 = vadd.f32 %v496, %v512
    %v529 = vadd.f32 %v497, %v513
    %v530 = vadd.f32 %v498, %v514
    %v531 = vadd.f32 %v499, %v515
    %v532 = vadd.f32 %v500, %v516
    %v533 = vadd.f32 %v501, %v517
    %v534 = vadd.f32 %v502, %v518
    %v535 = vadd.f32 %v503, %v519
    %v536 = vadd.f32 %v504, %v520
    %v537 = vadd.f32 %v505, %v521
    %v538 = vadd.f32 %v506, %v522
    %v539 = vadd.f32 %v507, %v523
    %v540 = vadd.f32 %v508, %v524
    %v541 = vadd.f32 %v509, %v525
    %v542 = vadd.f32 %v526, %v90
    %v543 = vadd.f32 %v527, %v91
    %v544 = vadd.f32 %v528, %v92
    %v545 = vadd.f32 %v529, %v93
    %v546 = vadd.f32 %v530, %v94
    %v547 = vadd.f32 %v531, %v95
    %v548 = vadd.f32 %v532, %v96
    %v549 = vadd.f32 %v533, %v97
    %v550 = vadd.f32 %v534, %v98
    %v551 = vadd.f32 %v535, %v99
    %v552 = vadd.f32 %v536, %v100
    %v553 = vadd.f32 %v537, %v101
    %v554 = vadd.f32 %v538, %v102
    %v555 = vadd.f32 %v539, %v103
    %v556 = vadd.f32 %v540, %v104
    %v557 = vadd.f32 %v541, %v105
    %558 = vmatprep.subr.mxu0 0.0
    %559 = vmatpush1.msra.mxu0 %v557
    %560 = vmatprep.subr.mxu0 0.0
    %561 = vmatpush1.msra.mxu0 %v556
    %562 = vmatprep.subr.mxu0 0.0
    %563 = vmatpush1.msra.mxu0 %v555
    %564 = vmatprep.subr.mxu0 0.0
    %565 = vmatpush1.msra.mxu0 %v554
    %566 = vmatprep.subr.mxu0 0.0
    %567 = vmatpush1.msra.mxu0 %v553
    %568 = vmatprep.subr.mxu0 0.0
    %569 = vmatpush1.msra.mxu0 %v552
    %570 = vmatprep.subr.mxu0 0.0
    %571 = vmatpush1.msra.mxu0 %v551
    %572 = vmatprep.subr.mxu0 0.0
    %573 = vmatpush1.msra.mxu0 %v550
    %574 = vmatprep.subr.mxu0 0.0
    %575 = vmatpush1.msra.mxu0 %v549
    %576 = vmatprep.subr.mxu0 0.0
    %577 = vmatpush1.msra.mxu0 %v548
    %578 = vmatprep.subr.mxu0 0.0
    %579 = vmatpush1.msra.mxu0 %v547
    %580 = vmatprep.subr.mxu0 0.0
    %581 = vmatpush1.msra.mxu0 %v546
    %582 = vmatprep.subr.mxu0 0.0
    %583 = vmatpush1.msra.mxu0 %v545
    %584 = vmatprep.subr.mxu0 0.0
    %585 = vmatpush1.msra.mxu0 %v544
    %586 = vmatprep.subr.mxu0 0.0
    %587 = vmatpush1.msra.mxu0 %v543
    %588 = vmatprep.subr.mxu0 0.0
    %589 = vmatpush1.msra.mxu0 %v542
    %590 = vmatprep.subr.mxu0 0.0
    %591 = vmatpush2.msra.mxu0 0.0
    %592 = vmatprep.subr.mxu0 0.0
    %593 = vmatpush2.msra.mxu0 0.0
    %594 = vmatprep.subr.mxu0 0.0
    %595 = vmatpush2.msra.mxu0 0.0
    %596 = vmatprep.subr.mxu0 0.0
    %597 = vmatpush2.msra.mxu0 0.0
    %598 = vmatprep.subr.mxu0 0.0
    %599 = vmatpush2.msra.mxu0 0.0
    %600 = vmatprep.subr.mxu0 0.0
    %601 = vmatpush2.msra.mxu0 0.0
    %602 = vmatprep.subr.mxu0 0.0
    %603 = vmatpush2.msra.mxu0 0.0
    %604 = vmatprep.subr.mxu0 0.0
    %605 = vmatpush2.msra.mxu0 0.0
    %606 = vmatprep.subr.mxu0 0.0
    %607 = vmatpush2.msra.mxu0 0.0
    %608 = vmatprep.subr.mxu0 0.0
    %609 = vmatpush2.msra.mxu0 0.0
    %610 = vmatprep.subr.mxu0 0.0
    %611 = vmatpush2.msra.mxu0 0.0
    %612 = vmatprep.subr.mxu0 0.0
    %613 = vmatpush2.msra.mxu0 0.0
    %614 = vmatprep.subr.mxu0 0.0
    %615 = vmatpush2.msra.mxu0 0.0
    %616 = vmatprep.subr.mxu0 0.0
    %617 = vmatpush2.msra.mxu0 0.0
    %618 = vmatprep.subr.mxu0 0.0
    %619 = vmatpush2.msra.mxu0 0.0
    %620 = vmatprep.subr.mxu0 0.0
    %621 = vmatpush2.msra.mxu0 0.0
    %622 = vmatprep.mubr.f32.mxu0 0.0
    %623 = vmatmul.mubr.f32.gmra.mxu0 %v122
    %v624 = vpop.f32.mrf.mxu0
    %v625 = vadd.f32 0.0, %v624
    %v626 = vpop.f32.mrf.mxu0
    %627 = vmatprep.mubr.f32.mxu0 0.0
    %628 = vmatmul.mubr.f32.gmra.mxu0 %v123
    %v629 = vpop.f32.mrf.mxu0
    %v630 = vadd.f32 0.0, %v629
    %v631 = vpop.f32.mrf.mxu0
    %632 = vmatprep.mubr.f32.mxu0 0.0
    %633 = vmatmul.mubr.f32.gmra.mxu0 %v124
    %v634 = vpop.f32.mrf.mxu0
    %v635 = vadd.f32 0.0, %v634
    %v636 = vpop.f32.mrf.mxu0
    %637 = vmatprep.mubr.f32.mxu0 0.0
    %638 = vmatmul.mubr.f32.gmra.mxu0 %v125
    %v639 = vpop.f32.mrf.mxu0
    %v640 = vadd.f32 0.0, %v639
    %v641 = vpop.f32.mrf.mxu0
    %642 = vmatprep.mubr.f32.mxu0 0.0
    %643 = vmatmul.mubr.f32.gmra.mxu0 %v126
    %v644 = vpop.f32.mrf.mxu0
    %v645 = vadd.f32 0.0, %v644
    %v646 = vpop.f32.mrf.mxu0
    %647 = vmatprep.mubr.f32.mxu0 0.0
    %648 = vmatmul.mubr.f32.gmra.mxu0 %v127
    %v649 = vpop.f32.mrf.mxu0
    %v650 = vadd.f32 0.0, %v649
    %v651 = vpop.f32.mrf.mxu0
    %652 = vmatprep.mubr.f32.mxu0 0.0
    %653 = vmatmul.mubr.f32.gmra.mxu0 %v128
    %v654 = vpop.f32.mrf.mxu0
    %v655 = vadd.f32 0.0, %v654
    %v656 = vpop.f32.mrf.mxu0
    %657 = vmatprep.mubr.f32.mxu0 0.0
    %658 = vmatmul.mubr.f32.gmra.mxu0 %v129
    %v659 = vpop.f32.mrf.mxu0
    %v660 = vadd.f32 0.0, %v659
    %v661 = vpop.f32.mrf.mxu0
    %662 = vmatprep.mubr.f32.mxu0 0.0
    %663 = vmatmul.mubr.f32.gmra.mxu0 %v130
    %v664 = vpop.f32.mrf.mxu0
    %v665 = vadd.f32 0.0, %v664
    %v666 = vpop.f32.mrf.mxu0
    %667 = vmatprep.mubr.f32.mxu0 0.0
    %668 = vmatmul.mubr.f32.gmra.mxu0 %v131
    %v669 = vpop.f32.mrf.mxu0
    %v670 = vadd.f32 0.0, %v669
    %v671 = vpop.f32.mrf.mxu0
    %672 = vmatprep.mubr.f32.mxu0 0.0
    %673 = vmatmul.mubr.f32.gmra.mxu0 %v132
    %v674 = vpop.f32.mrf.mxu0
    %v675 = vadd.f32 0.0, %v674
    %v676 = vpop.f32.mrf.mxu0
    %677 = vmatprep.mubr.f32.mxu0 0.0
    %678 = vmatmul.mubr.f32.gmra.mxu0 %v133
    %v679 = vpop.f32.mrf.mxu0
    %v680 = vadd.f32 0.0, %v679
    %v681 = vpop.f32.mrf.mxu0
    %682 = vmatprep.mubr.f32.mxu0 0.0
    %683 = vmatmul.mubr.f32.gmra.mxu0 %v134
    %v684 = vpop.f32.mrf.mxu0
    %v685 = vadd.f32 0.0, %v684
    %v686 = vpop.f32.mrf.mxu0
    %687 = vmatprep.mubr.f32.mxu0 0.0
    %688 = vmatmul.mubr.f32.gmra.mxu0 %v135
    %v689 = vpop.f32.mrf.mxu0
    %v690 = vadd.f32 0.0, %v689
    %v691 = vpop.f32.mrf.mxu0
    %692 = vmatprep.mubr.f32.mxu0 0.0
    %693 = vmatmul.mubr.f32.gmra.mxu0 %v136
    %v694 = vpop.f32.mrf.mxu0
    %v695 = vadd.f32 0.0, %v694
    %v696 = vpop.f32.mrf.mxu0
    %697 = vmatprep.mubr.f32.mxu0 0.0
    %698 = vmatmul.mubr.f32.gmra.mxu0 %v137
    %v699 = vpop.f32.mrf.mxu0
    %v700 = vadd.f32 0.0, %v699
    %v701 = vpop.f32.mrf.mxu0
    %702 = vdwg.mxu0
    %v703 = vmul.f32 %v283, %v625
    %v704 = vmul.f32 %v283, %v630
    %v705 = vmul.f32 %v283, %v635
    %v706 = vmul.f32 %v283, %v640
    %v707 = vmul.f32 %v283, %v645
    %v708 = vmul.f32 %v283, %v650
    %v709 = vmul.f32 %v283, %v655
    %v710 = vmul.f32 %v283, %v660
    %v711 = vmul.f32 %v283, %v665
    %v712 = vmul.f32 %v283, %v670
    %v713 = vmul.f32 %v283, %v675
    %v714 = vmul.f32 %v283, %v680
    %v715 = vmul.f32 %v283, %v685
    %v716 = vmul.f32 %v283, %v690
    %v717 = vmul.f32 %v283, %v695
    %v718 = vmul.f32 %v283, %v700
    %v719 = vmul.f32 %v300, %v542
    %v720 = vmul.f32 %v300, %v543
    %v721 = vmul.f32 %v300, %v544
    %v722 = vmul.f32 %v300, %v545
    %v723 = vmul.f32 %v300, %v546
    %v724 = vmul.f32 %v300, %v547
    %v725 = vmul.f32 %v300, %v548
    %v726 = vmul.f32 %v300, %v549
    %v727 = vmul.f32 %v300, %v550
    %v728 = vmul.f32 %v300, %v551
    %v729 = vmul.f32 %v300, %v552
    %v730 = vmul.f32 %v300, %v553
    %v731 = vmul.f32 %v300, %v554
    %v732 = vmul.f32 %v300, %v555
    %v733 = vmul.f32 %v300, %v556
    %v734 = vmul.f32 %v300, %v557
    %v735 = vadd.f32 %v703, %v719
    %v736 = vadd.f32 %v704, %v720
    %v737 = vadd.f32 %v705, %v721
    %v738 = vadd.f32 %v706, %v722
    %v739 = vadd.f32 %v707, %v723
    %v740 = vadd.f32 %v708, %v724
    %v741 = vadd.f32 %v709, %v725
    %v742 = vadd.f32 %v710, %v726
    %v743 = vadd.f32 %v711, %v727
    %v744 = vadd.f32 %v712, %v728
    %v745 = vadd.f32 %v713, %v729
    %v746 = vadd.f32 %v714, %v730
    %v747 = vadd.f32 %v715, %v731
    %v748 = vadd.f32 %v716, %v732
    %v749 = vadd.f32 %v717, %v733
    %v750 = vadd.f32 %v718, %v734
    %v751 = vadd.f32 %v735, %v90
    %v752 = vadd.f32 %v736, %v91
    %v753 = vadd.f32 %v737, %v92
    %v754 = vadd.f32 %v738, %v93
    %v755 = vadd.f32 %v739, %v94
    %v756 = vadd.f32 %v740, %v95
    %v757 = vadd.f32 %v741, %v96
    %v758 = vadd.f32 %v742, %v97
    %v759 = vadd.f32 %v743, %v98
    %v760 = vadd.f32 %v744, %v99
    %v761 = vadd.f32 %v745, %v100
    %v762 = vadd.f32 %v746, %v101
    %v763 = vadd.f32 %v747, %v102
    %v764 = vadd.f32 %v748, %v103
    %v765 = vadd.f32 %v749, %v104
    %v766 = vadd.f32 %v750, %v105
    %767 = vmatprep.subr.mxu0 0.0
    %768 = vmatpush1.msra.mxu0 %v766
    %769 = vmatprep.subr.mxu0 0.0
    %770 = vmatpush1.msra.mxu0 %v765
    %771 = vmatprep.subr.mxu0 0.0
    %772 = vmatpush1.msra.mxu0 %v764
    %773 = vmatprep.subr.mxu0 0.0
    %774 = vmatpush1.msra.mxu0 %v763
    %775 = vmatprep.subr.mxu0 0.0
    %776 = vmatpush1.msra.mxu0 %v762
    %777 = vmatprep.subr.mxu0 0.0
    %778 = vmatpush1.msra.mxu0 %v761
    %779 = vmatprep.subr.mxu0 0.0
    %780 = vmatpush1.msra.mxu0 %v760
    %781 = vmatprep.subr.mxu0 0.0
    %782 = vmatpush1.msra.mxu0 %v759
    %783 = vmatprep.subr.mxu0 0.0
    %784 = vmatpush1.msra.mxu0 %v758
    %785 = vmatprep.subr.mxu0 0.0
    %786 = vmatpush1.msra.mxu0 %v757
    %787 = vmatprep.subr.mxu0 0.0
    %788 = vmatpush1.msra.mxu0 %v756
    %789 = vmatprep.subr.mxu0 0.0
    %790 = vmatpush1.msra.mxu0 %v755
    %791 = vmatprep.subr.mxu0 0.0
    %792 = vmatpush1.msra.mxu0 %v754
    %793 = vmatprep.subr.mxu0 0.0
    %794 = vmatpush1.msra.mxu0 %v753
    %795 = vmatprep.subr.mxu0 0.0
    %796 = vmatpush1.msra.mxu0 %v752
    %797 = vmatprep.subr.mxu0 0.0
    %798 = vmatpush1.msra.mxu0 %v751
    %799 = vmatprep.subr.mxu0 0.0
    %800 = vmatpush2.msra.mxu0 0.0
    %801 = vmatprep.subr.mxu0 0.0
    %802 = vmatpush2.msra.mxu0 0.0
    %803 = vmatprep.subr.mxu0 0.0
    %804 = vmatpush2.msra.mxu0 0.0
    %805 = vmatprep.subr.mxu0 0.0
    %806 = vmatpush2.msra.mxu0 0.0
    %807 = vmatprep.subr.mxu0 0.0
    %808 = vmatpush2.msra.mxu0 0.0
    %809 = vmatprep.subr.mxu0 0.0
    %810 = vmatpush2.msra.mxu0 0.0
    %811 = vmatprep.subr.mxu0 0.0
    %812 = vmatpush2.msra.mxu0 0.0
    %813 = vmatprep.subr.mxu0 0.0
    %814 = vmatpush2.msra.mxu0 0.0
    %815 = vmatprep.subr.mxu0 0.0
    %816 = vmatpush2.msra.mxu0 0.0
    %817 = vmatprep.subr.mxu0 0.0
    %818 = vmatpush2.msra.mxu0 0.0
    %819 = vmatprep.subr.mxu0 0.0
    %820 = vmatpush2.msra.mxu0 0.0
    %821 = vmatprep.subr.mxu0 0.0
    %822 = vmatpush2.msra.mxu0 0.0
    %823 = vmatprep.subr.mxu0 0.0
    %824 = vmatpush2.msra.mxu0 0.0
    %825 = vmatprep.subr.mxu0 0.0
    %826 = vmatpush2.msra.mxu0 0.0
    %827 = vmatprep.subr.mxu0 0.0
    %828 = vmatpush2.msra.mxu0 0.0
    %829 = vmatprep.subr.mxu0 0.0
    %830 = vmatpush2.msra.mxu0 0.0
    %831 = vmatprep.mubr.f32.mxu0 0.0
    %832 = vmatmul.mubr.f32.gmra.mxu0 %v122
    %v833 = vpop.f32.mrf.mxu0
    %v834 = vadd.f32 0.0, %v833
    %v835 = vpop.f32.mrf.mxu0
    %836 = vmatprep.mubr.f32.mxu0 0.0
    %837 = vmatmul.mubr.f32.gmra.mxu0 %v123
    %v838 = vpop.f32.mrf.mxu0
    %v839 = vadd.f32 0.0, %v838
    %v840 = vpop.f32.mrf.mxu0
    %841 = vmatprep.mubr.f32.mxu0 0.0
    %842 = vmatmul.mubr.f32.gmra.mxu0 %v124
    %v843 = vpop.f32.mrf.mxu0
    %v844 = vadd.f32 0.0, %v843
    %v845 = vpop.f32.mrf.mxu0
    %846 = vmatprep.mubr.f32.mxu0 0.0
    %847 = vmatmul.mubr.f32.gmra.mxu0 %v125
    %v848 = vpop.f32.mrf.mxu0
    %v849 = vadd.f32 0.0, %v848
    %v850 = vpop.f32.mrf.mxu0
    %851 = vmatprep.mubr.f32.mxu0 0.0
    %852 = vmatmul.mubr.f32.gmra.mxu0 %v126
    %v853 = vpop.f32.mrf.mxu0
    %v854 = vadd.f32 0.0, %v853
    %v855 = vpop.f32.mrf.mxu0
    %856 = vmatprep.mubr.f32.mxu0 0.0
    %857 = vmatmul.mubr.f32.gmra.mxu0 %v127
    %v858 = vpop.f32.mrf.mxu0
    %v859 = vadd.f32 0.0, %v858
    %v860 = vpop.f32.mrf.mxu0
    %861 = vmatprep.mubr.f32.mxu0 0.0
    %862 = vmatmul.mubr.f32.gmra.mxu0 %v128
    %v863 = vpop.f32.mrf.mxu0
    %v864 = vadd.f32 0.0, %v863
    %v865 = vpop.f32.mrf.mxu0
    %866 = vmatprep.mubr.f32.mxu0 0.0
    %867 = vmatmul.mubr.f32.gmra.mxu0 %v129
    %v868 = vpop.f32.mrf.mxu0
    %v869 = vadd.f32 0.0, %v868
    %v870 = vpop.f32.mrf.mxu0
    %871 = vmatprep.mubr.f32.mxu0 0.0
    %872 = vmatmul.mubr.f32.gmra.mxu0 %v130
    %v873 = vpop.f32.mrf.mxu0
    %v874 = vadd.f32 0.0, %v873
    %v875 = vpop.f32.mrf.mxu0
    %876 = vmatprep.mubr.f32.mxu0 0.0
    %877 = vmatmul.mubr.f32.gmra.mxu0 %v131
    %v878 = vpop.f32.mrf.mxu0
    %v879 = vadd.f32 0.0, %v878
    %v880 = vpop.f32.mrf.mxu0
    %881 = vmatprep.mubr.f32.mxu0 0.0
    %882 = vmatmul.mubr.f32.gmra.mxu0 %v132
    %v883 = vpop.f32.mrf.mxu0
    %v884 = vadd.f32 0.0, %v883
    %v885 = vpop.f32.mrf.mxu0
    %886 = vmatprep.mubr.f32.mxu0 0.0
    %887 = vmatmul.mubr.f32.gmra.mxu0 %v133
    %v888 = vpop.f32.mrf.mxu0
    %v889 = vadd.f32 0.0, %v888
    %v890 = vpop.f32.mrf.mxu0
    %891 = vmatprep.mubr.f32.mxu0 0.0
    %892 = vmatmul.mubr.f32.gmra.mxu0 %v134
    %v893 = vpop.f32.mrf.mxu0
    %v894 = vadd.f32 0.0, %v893
    %v895 = vpop.f32.mrf.mxu0
    %896 = vmatprep.mubr.f32.mxu0 0.0
    %897 = vmatmul.mubr.f32.gmra.mxu0 %v135
    %v898 = vpop.f32.mrf.mxu0
    %v899 = vadd.f32 0.0, %v898
    %v900 = vpop.f32.mrf.mxu0
    %901 = vmatprep.mubr.f32.mxu0 0.0
    %902 = vmatmul.mubr.f32.gmra.mxu0 %v136
    %v903 = vpop.f32.mrf.mxu0
    %v904 = vadd.f32 0.0, %v903
    %v905 = vpop.f32.mrf.mxu0
    %906 = vmatprep.mubr.f32.mxu0 0.0
    %907 = vmatmul.mubr.f32.gmra.mxu0 %v137
    %v908 = vpop.f32.mrf.mxu0
    %v909 = vadd.f32 0.0, %v908
    %v910 = vpop.f32.mrf.mxu0
    %911 = vdwg.mxu0
    %v912 = vmul.f32 %v283, %v834
    %v913 = vmul.f32 %v283, %v839
    %v914 = vmul.f32 %v283, %v844
    %v915 = vmul.f32 %v283, %v849
    %v916 = vmul.f32 %v283, %v854
    %v917 = vmul.f32 %v283, %v859
    %v918 = vmul.f32 %v283, %v864
    %v919 = vmul.f32 %v283, %v869
    %v920 = vmul.f32 %v283, %v874
    %v921 = vmul.f32 %v283, %v879
    %v922 = vmul.f32 %v283, %v884
    %v923 = vmul.f32 %v283, %v889
    %v924 = vmul.f32 %v283, %v894
    %v925 = vmul.f32 %v283, %v899
    %v926 = vmul.f32 %v283, %v904
    %v927 = vmul.f32 %v283, %v909
    %v928 = vmul.f32 %v300, %v751
    %v929 = vmul.f32 %v300, %v752
    %v930 = vmul.f32 %v300, %v753
    %v931 = vmul.f32 %v300, %v754
    %v932 = vmul.f32 %v300, %v755
    %v933 = vmul.f32 %v300, %v756
    %v934 = vmul.f32 %v300, %v757
    %v935 = vmul.f32 %v300, %v758
    %v936 = vmul.f32 %v300, %v759
    %v937 = vmul.f32 %v300, %v760
    %v938 = vmul.f32 %v300, %v761
    %v939 = vmul.f32 %v300, %v762
    %v940 = vmul.f32 %v300, %v763
    %v941 = vmul.f32 %v300, %v764
    %v942 = vmul.f32 %v300, %v765
    %v943 = vmul.f32 %v300, %v766
    %v944 = vadd.f32 %v912, %v928
    %v945 = vadd.f32 %v913, %v929
    %v946 = vadd.f32 %v914, %v930
    %v947 = vadd.f32 %v915, %v931
    %v948 = vadd.f32 %v916, %v932
    %v949 = vadd.f32 %v917, %v933
    %v950 = vadd.f32 %v918, %v934
    %v951 = vadd.f32 %v919, %v935
    %v952 = vadd.f32 %v920, %v936
    %v953 = vadd.f32 %v921, %v937
    %v954 = vadd.f32 %v922, %v938
    %v955 = vadd.f32 %v923, %v939
    %v956 = vadd.f32 %v924, %v940
    %v957 = vadd.f32 %v925, %v941
    %v958 = vadd.f32 %v926, %v942
    %v959 = vadd.f32 %v927, %v943
    %v960 = vadd.f32 %v944, %v90
    %v961 = vadd.f32 %v945, %v91
    %v962 = vadd.f32 %v946, %v92
    %v963 = vadd.f32 %v947, %v93
    %v964 = vadd.f32 %v948, %v94
    %v965 = vadd.f32 %v949, %v95
    %v966 = vadd.f32 %v950, %v96
    %v967 = vadd.f32 %v951, %v97
    %v968 = vadd.f32 %v952, %v98
    %v969 = vadd.f32 %v953, %v99
    %v970 = vadd.f32 %v954, %v100
    %v971 = vadd.f32 %v955, %v101
    %v972 = vadd.f32 %v956, %v102
    %v973 = vadd.f32 %v957, %v103
    %v974 = vadd.f32 %v958, %v104
    %v975 = vadd.f32 %v959, %v105
    %976 = vst [vmem:[#allocation10] sm:$0xff] %v960
    %977 = vst [vmem:[#allocation10 + $0x8] sm:$0xff] %v961
    %978 = vst [vmem:[#allocation10 + $0x10] sm:$0xff] %v962
    %979 = vst [vmem:[#allocation10 + $0x18] sm:$0xff] %v963
    %980 = vst [vmem:[#allocation10 + $0x20] sm:$0xff] %v964
    %981 = vst [vmem:[#allocation10 + $0x28] sm:$0xff] %v965
    %982 = vst [vmem:[#allocation10 + $0x30] sm:$0xff] %v966
    %983 = vst [vmem:[#allocation10 + $0x38] sm:$0xff] %v967
    %984 = vst [vmem:[#allocation10 + $0x40] sm:$0xff] %v968
    %985 = vst [vmem:[#allocation10 + $0x48] sm:$0xff] %v969
    %986 = vst [vmem:[#allocation10 + $0x50] sm:$0xff] %v970
    %987 = vst [vmem:[#allocation10 + $0x58] sm:$0xff] %v971
    %988 = vst [vmem:[#allocation10 + $0x60] sm:$0xff] %v972
    %989 = vst [vmem:[#allocation10 + $0x68] sm:$0xff] %v973
    %990 = vst [vmem:[#allocation10 + $0x70] sm:$0xff] %v974
    %991 = vst [vmem:[#allocation10 + $0x78] sm:$0xff] %v975
    // Predicated region
    $region34: #{tpu_custom_call.1} parent=1 // pred_check
      _
    $region35: #{tpu_custom_call.1} parent=1 // pred_check_branch
      %993 = sbr.rel (0) target = $region37
    $region36: #{tpu_custom_call.1} parent=1 // pred_region
      %s995 = ssub.s32 2048, 2048
      %996 = vsyncadd [#allocation4], %s995
      %s997 = sshll.u32 [#allocation10], 4
      %s998 = int_to_ptr.vmem [resolvable:$true] %s997
      %1003 = dma.vmem_to_hbm [thread:$0]  %s998, 2048, %s4, [#allocation4], 128, 128, 8
    $region37: #{tpu_custom_call.1} parent=1 // pred_fallthru
      _
    // Predicated region
    $region38: #{tpu_custom_call.1} parent=1 // pred_check
      _
    $region39: #{tpu_custom_call.1} parent=1 // pred_check_branch
      %1005 = sbr.rel (0) target = $region41
    $region40: #{tpu_custom_call.1} parent=1 // pred_region
      %1006 = dma.done [#allocation4], 2048
    $region41: #{tpu_custom_call.1} parent=1 // pred_fallthru
      _
    %1007 = vsyncpa [#allocation3], 1
    %1008 = vsyncpa [#allocation8], 1
    %1009 = vsyncpa [#allocation4], 1
    %1010 = vsyncpa [#allocation5], 1

</llo_original>
